<compile_context>
chip_gen: v7x
topology: tpu7x:2x2x1
jax: 0.10.0
libtpu: 0.0.40
codegen_flags: <defaults>
</compile_context>

<pallas_src>
import functools

import jax
import jax.numpy as jnp
import numpy as np
from jax.experimental import pallas as pl
from jax.experimental.pallas import tpu as pltpu


def _round_up(x, m):
    return (x + m - 1) // m * m


def _cdiv(a, b):
    return -(-a // b)


def _log1p(u):
    # Accurate log(1 + u) for u in (0, 1], built only from ops that are
    # guaranteed to lower in Mosaic (log / div / compare / select).
    w = 1.0 + u
    denom = jnp.where(w == 1.0, jnp.float32(1.0), w - 1.0)
    return jnp.where(w == 1.0, u, jnp.log(w) * (u / denom))


def _mixloss_kernel(out_ref, mc_ref, mb_ref, tgt_ref, tgtc_ref, tgtb_ref,
                    part_ref):
    """One row tile -> 6 partial sums in sublanes 0..5 of a (1, 8, 128) block.

    Partials: [ce_seg, ce_body, bce_pos, bce_neg, pos_num, neg_num].
    Label value -1 marks wrapper row-padding and is excluded everywhere.
    (Genuine out-of-range labels would be treated as logit 0, like before.)
    """
    target = tgt_ref[...]          # (n, th, w) int32
    target_c = tgtc_ref[...]
    target_b = tgtb_ref[...]

    def ce_partial(ref, labels):
        c = ref.shape[1]
        # Pass 1: running max over classes; pick the labelled (raw) logit here
        # so pass 2 is pure sub/exp/add (keeps the v7x VALU hot loop lean).
        x0 = ref[:, 0, :, :].astype(jnp.float32)
        m = x0
        picked = jnp.where(labels == 0, x0, 0.0)
        for cc in range(1, c):
            x = ref[:, cc, :, :].astype(jnp.float32)
            m = jnp.maximum(m, x)
            picked = jnp.where(labels == cc, x, picked)
        # Pass 2: streamed sum-exp (all math in f32 after the in-kernel upcast).
        s = jnp.zeros_like(m)
        for cc in range(c):
            s = s + jnp.exp(ref[:, cc, :, :].astype(jnp.float32) - m)
        ce = jnp.log(s) + m - picked
        valid = labels >= 0
        return jnp.sum(jnp.where(valid, ce, 0.0))

    ce1 = ce_partial(out_ref, target)
    ce2 = ce_partial(mc_ref, target_c)

    # Class-balanced BCE-with-logits partial sums (weights applied in wrapper).
    x = mb_ref[:, 0, :, :].astype(jnp.float32)
    t = target_b.astype(jnp.float32)
    bce_elem = jnp.maximum(x, 0.0) - x * t + _log1p(jnp.exp(-jnp.abs(x)))
    pos = target_b == 1
    neg = target_b == 0             # -1 padding and >1 "ignore" both excluded
    zero = jnp.zeros_like(bce_elem)
    bce_pos = jnp.sum(jnp.where(pos, bce_elem, zero))
    bce_neg = jnp.sum(jnp.where(neg, bce_elem, zero))
    pos_num = jnp.sum(pos.astype(jnp.float32))
    neg_num = jnp.sum(neg.astype(jnp.float32))

    # Lane-dense per-tile partial output: quantity k broadcast across sublane k
    # (single unmasked full-block store; the wrapper reads lane 0).
    rid = jax.lax.broadcasted_iota(jnp.int32, (1, 8, 128), 1)
    blk = jnp.where(rid == 0, ce1, 0.0)
    blk = jnp.where(rid == 1, ce2, blk)
    blk = jnp.where(rid == 2, bce_pos, blk)
    blk = jnp.where(rid == 3, bce_neg, blk)
    blk = jnp.where(rid == 4, pos_num, blk)
    blk = jnp.where(rid == 5, neg_num, blk)
    part_ref[...] = blk


def _min_pool(t, k):
    """k x k min-pool (erosion) with zero padding, via separable shifted mins."""
    p = (k - 1) // 2
    _, h_, w_ = t.shape
    tp = jnp.pad(t, ((0, 0), (p, p), (p, p)))
    row = functools.reduce(jnp.minimum,
                           [tp[:, :, dx:dx + w_] for dx in range(k)])
    return functools.reduce(jnp.minimum,
                            [row[:, dy:dy + h_, :] for dy in range(k)])


def _vmem_limit_bytes():
    # Generation-aware budget: ~75% of physical per-TensorCore VMEM
    # (48 MiB on v7x's 64 MiB, 96 MiB on v5e/v6e's 128 MiB).
    phys = 64 * 1024 * 1024
    try:
        info = pltpu.get_tpu_info()
        phys = int(getattr(info, "vmem_capacity_bytes", phys)) or phys
    except Exception:
        pass
    return (phys * 3) // 4


def _choose_tile_h(n, c, h, w, logit_bytes, budget_bytes):
    """Largest multiple-of-16 row tile (even split of the padded height) whose
    double-buffered input blocks + f32 compute temporaries fit the budget."""
    w_pad = _round_up(w, 128)
    # double-buffered blocks: 2 logit streams + edge logits + 3 int32 label planes
    per_row_blocks = 2 * (2 * c * logit_bytes + logit_bytes + 3 * 4) * n * w_pad
    # in-kernel f32 temporaries (m / picked / s / class slab / BCE terms) ~ 6 slabs
    per_row_temps = 6 * 4 * n * w_pad
    per_row = per_row_blocks + per_row_temps
    h16 = _round_up(h, 16)
    th_max = min(h16, max(16, (budget_bytes // per_row) // 16 * 16))
    num_tiles = _cdiv(h16, th_max)
    return 16 * _cdiv(h16 // 16, num_tiles)


def mixloss_3_pallas(output, m_c, m_b, target, aux_weight=20.0, tile_h=None):
    """Mirrors mixloss_3.forward: output/m_c/m_b are tuples, [0] is used."""
    out0 = output[0]                       # (N, C, H, W) seg logits, native dtype
    mc0 = m_c[0]                           # (N, C, H, W) body logits
    mb0 = m_b[0]                           # (N, 1, H, W) edge logits
    target = target.astype(jnp.int32)      # (N, H, W)
    n, c, h, w = out0.shape

    # Wrapper-precomputed erosions (tiny vs. the logit stream); keeps the
    # kernel free of halo handling and erosion temporaries.
    target_c = _min_pool(target, 3)                 # tensor_center(ksize=3)
    target_b = target - _min_pool(target, 7)        # tensor_erode(ksize=7)

    vmem_limit = _vmem_limit_bytes()
    if tile_h is None:
        tile_h = _choose_tile_h(
            n, c, h, w, jnp.dtype(out0.dtype).itemsize,
            max(vmem_limit - 8 * 1024 * 1024, 8 * 1024 * 1024))
    assert tile_h % 16 == 0, tile_h

    # Pad the row axis to a multiple of the tile; padded label rows get the
    # sentinel -1 and are masked in-kernel (normalisation uses the true h).
    h_pad = _round_up(h, tile_h)
    if h_pad != h:
        pr = h_pad - h
        out0 = jnp.pad(out0, ((0, 0), (0, 0), (0, pr), (0, 0)))
        mc0 = jnp.pad(mc0, ((0, 0), (0, 0), (0, pr), (0, 0)))
        mb0 = jnp.pad(mb0, ((0, 0), (0, 0), (0, pr), (0, 0)))
        lpad = ((0, 0), (0, pr), (0, 0))
        target = jnp.pad(target, lpad, constant_values=-1)
        target_c = jnp.pad(target_c, lpad, constant_values=-1)
        target_b = jnp.pad(target_b, lpad, constant_values=-1)
    num_tiles = h_pad // tile_h

    logit_spec = pl.BlockSpec((n, c, tile_h, w), lambda i: (0, 0, i, 0))
    edge_spec = pl.BlockSpec((n, 1, tile_h, w), lambda i: (0, 0, i, 0))
    label_spec = pl.BlockSpec((n, tile_h, w), lambda i: (0, i, 0))

    parts = pl.pallas_call(
        _mixloss_kernel,
        grid=(num_tiles,),
        out_shape=jax.ShapeDtypeStruct((num_tiles, 8, 128), jnp.float32),
        in_specs=[logit_spec, logit_spec, edge_spec,
                  label_spec, label_spec, label_spec],
        out_specs=pl.BlockSpec((1, 8, 128), lambda i: (i, 0, 0)),
        compiler_params=pltpu.CompilerParams(
            # No cross-tile state -> both TensorCores can split the grid (v7x).
            dimension_semantics=("parallel",),
            vmem_limit_bytes=vmem_limit),
    )(out0, mc0, mb0, target, target_c, target_b)

    # Final 6-way reduction + loss finalisation in plain JAX.
    col = parts[:, :, 0]                                    # (num_tiles, 8)
    ce1 = jnp.sum(col[:, 0])
    ce2 = jnp.sum(col[:, 1])
    bce_pos = jnp.sum(col[:, 2])
    bce_neg = jnp.sum(col[:, 3])
    # Per-tile counts are exact in f32; combine them exactly in int32.
    pos_num = jnp.sum(jnp.round(col[:, 4]).astype(jnp.int32)).astype(jnp.float32)
    neg_num = jnp.sum(jnp.round(col[:, 5]).astype(jnp.int32)).astype(jnp.float32)

    npix = jnp.float32(n * h * w)
    loss_seg = ce1 / npix
    loss_body = ce2 / npix
    s_num = pos_num + neg_num
    s_safe = jnp.where(s_num > 0.0, s_num, jnp.float32(1.0))
    loss_edge = (neg_num / s_safe * bce_pos + pos_num / s_safe * bce_neg) / npix
    loss_sum = loss_seg + loss_body + jnp.float32(aux_weight) * loss_edge
    return (dict(loss=loss_sum), dict(loss_seg=loss_seg),
            dict(loss_edge=loss_edge))


def _reference(out0, mc0, mb0, target, aux_weight=20.0):
    """Pure-JAX mirror of the PyTorch semantics, for a correctness check."""
    N, C, H, W = out0.shape
    tpad = jnp.pad(target.astype(jnp.int32), ((0, 0), (3, 3), (3, 3)))

    def erode(p):
        sls = [tpad[:, 3 + dy:3 + dy + H, 3 + dx:3 + dx + W]
               for dy in range(-p, p + 1) for dx in range(-p, p + 1)]
        return functools.reduce(jnp.minimum, sls)

    target_c = erode(1)
    target_b = target - erode(3)

    def ce(logits, tgt):
        lse = jax.scipy.special.logsumexp(logits, axis=1)
        picked = jnp.take_along_axis(logits, tgt[:, None], axis=1)[:, 0]
        return jnp.mean(lse - picked)

    loss1 = ce(out0, target)
    loss2 = ce(mc0, target_c)

    x = mb0[:, 0]
    t = target_b.astype(jnp.float32)
    bce_elem = jnp.maximum(x, 0.0) - x * t + jnp.log1p(jnp.exp(-jnp.abs(x)))
    pos = target_b == 1
    neg = target_b == 0
    pn = jnp.sum(pos).astype(jnp.float32)
    nn_ = jnp.sum(neg).astype(jnp.float32)
    sn = pn + nn_
    wgt = jnp.where(pos, nn_ / sn, jnp.where(neg, pn / sn, 0.0))
    loss3 = jnp.mean(wgt * bce_elem)
    return loss1 + loss2 + aux_weight * loss3, loss1, loss3


if __name__ == "__main__":
    key = jax.random.PRNGKey(0)

    def make_case(seed, n, c, h, w, dtype, max_label):
        ks = jax.random.split(jax.random.fold_in(key, seed), 4)
        out0 = jax.random.normal(ks[0], (n, c, h, w), jnp.float32).astype(dtype)
        mc0 = jax.random.normal(ks[1], (n, c, h, w), jnp.float32).astype(dtype)
        mb0 = jax.random.normal(ks[2], (n, 1, h, w), jnp.float32).astype(dtype)
        tgt = jax.random.randint(ks[3], (n, h, w), 0, max_label).astype(jnp.int32)
        return out0, mc0, mb0, tgt

    cases = [
        # (seed, N, C, H, W, dtype,        tile_h, max_label)
        (0, 2, 4, 32, 16, jnp.float32, None, 2),   # auto tile (single step)
        (0, 2, 4, 32, 16, jnp.bfloat16, 16, 2),    # bf16 streaming, 2-step grid
        (1, 2, 5, 24, 16, jnp.bfloat16, 16, 5),    # non-multiple H: pad + mask
    ]
    for seed, n, c, h, w, dtype, th, ml in cases:
        out0, mc0, mb0, tgt = make_case(seed, n, c, h, w, dtype, ml)
        # Reference sees the same (rounded) values the kernel streams.
        r_out, r_mc, r_mb = (x.astype(jnp.float32) for x in (out0, mc0, mb0))
        ref_sum, ref_seg, ref_edge = _reference(r_out, r_mc, r_mb, tgt, 20.0)

        d_loss, d_seg, d_edge = mixloss_3_pallas(
            (out0,), (mc0,), (mb0,), tgt, aux_weight=20.0, tile_h=th)
        jax.block_until_ready(
            (d_loss["loss"], d_seg["loss_seg"], d_edge["loss_edge"]))
        np.testing.assert_allclose(np.asarray(d_loss["loss"]),
                                   np.asarray(ref_sum), rtol=1e-5, atol=1e-5)
        np.testing.assert_allclose(np.asarray(d_seg["loss_seg"]),
                                   np.asarray(ref_seg), rtol=1e-5, atol=1e-5)
        np.testing.assert_allclose(np.asarray(d_edge["loss_edge"]),
                                   np.asarray(ref_edge), rtol=1e-5, atol=1e-5)

    print("KERNEL_OK")
</pallas_src>

<mosaic_0001>
module attributes {stable_mosaic.version = 11 : i64} {
  func.func @_mixloss_kernel(%arg0: i32, %arg1: memref<2x4x32x16xf32, #tpu.memory_space<vmem>>, %arg2: memref<2x4x32x16xf32, #tpu.memory_space<vmem>>, %arg3: memref<2x1x32x16xf32, #tpu.memory_space<vmem>>, %arg4: memref<2x32x16xi32, #tpu.memory_space<vmem>>, %arg5: memref<2x32x16xi32, #tpu.memory_space<vmem>>, %arg6: memref<2x32x16xi32, #tpu.memory_space<vmem>>, %arg7: memref<1x8x128xf32, #tpu.memory_space<vmem>>) attributes {dimension_semantics = [#tpu.dimension_semantics<parallel>], iteration_bounds = array<i64: 1>, scalar_prefetch = 0 : i64, scratch_operands = 0 : i64, tpu.core_type = #tpu.core_type<tc>, window_params = [{transform_indices = @transform_0, window_bounds = array<i64: 2, 4, 32, 16>}, {transform_indices = @transform_1, window_bounds = array<i64: 2, 4, 32, 16>}, {transform_indices = @transform_2, window_bounds = array<i64: 2, 1, 32, 16>}, {transform_indices = @transform_3, window_bounds = array<i64: 2, 32, 16>}, {transform_indices = @transform_4, window_bounds = array<i64: 2, 32, 16>}, {transform_indices = @transform_5, window_bounds = array<i64: 2, 32, 16>}, {transform_indices = @transform_6, window_bounds = array<i64: 1, 8, 128>}]} {
    %c0 = arith.constant 0 : index
    %c0_0 = arith.constant 0 : index
    %c0_1 = arith.constant 0 : index
    %0 = vector.load %arg4[%c0, %c0_0, %c0_1] : memref<2x32x16xi32, #tpu.memory_space<vmem>>, vector<2x32x16xi32>
    %c0_2 = arith.constant 0 : index
    %c0_3 = arith.constant 0 : index
    %c0_4 = arith.constant 0 : index
    %1 = vector.load %arg5[%c0_2, %c0_3, %c0_4] : memref<2x32x16xi32, #tpu.memory_space<vmem>>, vector<2x32x16xi32>
    %c0_5 = arith.constant 0 : index
    %c0_6 = arith.constant 0 : index
    %c0_7 = arith.constant 0 : index
    %2 = vector.load %arg6[%c0_5, %c0_6, %c0_7] : memref<2x32x16xi32, #tpu.memory_space<vmem>>, vector<2x32x16xi32>
    %c0_8 = arith.constant 0 : index
    %c0_9 = arith.constant 0 : index
    %c0_10 = arith.constant 0 : index
    %c0_11 = arith.constant 0 : index
    %3 = vector.load %arg1[%c0_8, %c0_9, %c0_10, %c0_11] : memref<2x4x32x16xf32, #tpu.memory_space<vmem>>, vector<2x1x32x16xf32>
    %4 = vector.shape_cast %3 : vector<2x1x32x16xf32> to vector<2x32x16xf32>
    %c0_i32 = arith.constant 0 : i32
    %5 = vector.broadcast %c0_i32 : i32 to vector<2x32x16xi32>
    %6 = arith.cmpi eq, %0, %5 : vector<2x32x16xi32>
    %cst = arith.constant 0.000000e+00 : f32
    %7 = vector.broadcast %cst : f32 to vector<2x32x16xf32>
    %8 = arith.select %6, %4, %7 : vector<2x32x16xi1>, vector<2x32x16xf32>
    %c0_12 = arith.constant 0 : index
    %c1 = arith.constant 1 : index
    %c0_13 = arith.constant 0 : index
    %c0_14 = arith.constant 0 : index
    %9 = vector.load %arg1[%c0_12, %c1, %c0_13, %c0_14] : memref<2x4x32x16xf32, #tpu.memory_space<vmem>>, vector<2x1x32x16xf32>
    %10 = vector.shape_cast %9 : vector<2x1x32x16xf32> to vector<2x32x16xf32>
    %11 = arith.maximumf %4, %10 : vector<2x32x16xf32>
    %c1_i32 = arith.constant 1 : i32
    %12 = vector.broadcast %c1_i32 : i32 to vector<2x32x16xi32>
    %13 = arith.cmpi eq, %0, %12 : vector<2x32x16xi32>
    %14 = arith.select %13, %10, %8 : vector<2x32x16xi1>, vector<2x32x16xf32>
    %c0_15 = arith.constant 0 : index
    %c2 = arith.constant 2 : index
    %c0_16 = arith.constant 0 : index
    %c0_17 = arith.constant 0 : index
    %15 = vector.load %arg1[%c0_15, %c2, %c0_16, %c0_17] : memref<2x4x32x16xf32, #tpu.memory_space<vmem>>, vector<2x1x32x16xf32>
    %16 = vector.shape_cast %15 : vector<2x1x32x16xf32> to vector<2x32x16xf32>
    %17 = arith.maximumf %11, %16 : vector<2x32x16xf32>
    %c2_i32 = arith.constant 2 : i32
    %18 = vector.broadcast %c2_i32 : i32 to vector<2x32x16xi32>
    %19 = arith.cmpi eq, %0, %18 : vector<2x32x16xi32>
    %20 = arith.select %19, %16, %14 : vector<2x32x16xi1>, vector<2x32x16xf32>
    %c0_18 = arith.constant 0 : index
    %c3 = arith.constant 3 : index
    %c0_19 = arith.constant 0 : index
    %c0_20 = arith.constant 0 : index
    %21 = vector.load %arg1[%c0_18, %c3, %c0_19, %c0_20] : memref<2x4x32x16xf32, #tpu.memory_space<vmem>>, vector<2x1x32x16xf32>
    %22 = vector.shape_cast %21 : vector<2x1x32x16xf32> to vector<2x32x16xf32>
    %23 = arith.maximumf %17, %22 : vector<2x32x16xf32>
    %c3_i32 = arith.constant 3 : i32
    %24 = vector.broadcast %c3_i32 : i32 to vector<2x32x16xi32>
    %25 = arith.cmpi eq, %0, %24 : vector<2x32x16xi32>
    %26 = arith.select %25, %22, %20 : vector<2x32x16xi1>, vector<2x32x16xf32>
    %cst_21 = arith.constant 0.000000e+00 : f32
    %27 = vector.broadcast %cst_21 : f32 to vector<2x32x16xf32>
    %c0_22 = arith.constant 0 : index
    %c0_23 = arith.constant 0 : index
    %c0_24 = arith.constant 0 : index
    %c0_25 = arith.constant 0 : index
    %28 = vector.load %arg1[%c0_22, %c0_23, %c0_24, %c0_25] : memref<2x4x32x16xf32, #tpu.memory_space<vmem>>, vector<2x1x32x16xf32>
    %29 = vector.shape_cast %28 : vector<2x1x32x16xf32> to vector<2x32x16xf32>
    %30 = arith.subf %29, %23 : vector<2x32x16xf32>
    %31 = math.exp %30 : vector<2x32x16xf32>
    %32 = arith.addf %27, %31 : vector<2x32x16xf32>
    %c0_26 = arith.constant 0 : index
    %c1_27 = arith.constant 1 : index
    %c0_28 = arith.constant 0 : index
    %c0_29 = arith.constant 0 : index
    %33 = vector.load %arg1[%c0_26, %c1_27, %c0_28, %c0_29] : memref<2x4x32x16xf32, #tpu.memory_space<vmem>>, vector<2x1x32x16xf32>
    %34 = vector.shape_cast %33 : vector<2x1x32x16xf32> to vector<2x32x16xf32>
    %35 = arith.subf %34, %23 : vector<2x32x16xf32>
    %36 = math.exp %35 : vector<2x32x16xf32>
    %37 = arith.addf %32, %36 : vector<2x32x16xf32>
    %c0_30 = arith.constant 0 : index
    %c2_31 = arith.constant 2 : index
    %c0_32 = arith.constant 0 : index
    %c0_33 = arith.constant 0 : index
    %38 = vector.load %arg1[%c0_30, %c2_31, %c0_32, %c0_33] : memref<2x4x32x16xf32, #tpu.memory_space<vmem>>, vector<2x1x32x16xf32>
    %39 = vector.shape_cast %38 : vector<2x1x32x16xf32> to vector<2x32x16xf32>
    %40 = arith.subf %39, %23 : vector<2x32x16xf32>
    %41 = math.exp %40 : vector<2x32x16xf32>
    %42 = arith.addf %37, %41 : vector<2x32x16xf32>
    %c0_34 = arith.constant 0 : index
    %c3_35 = arith.constant 3 : index
    %c0_36 = arith.constant 0 : index
    %c0_37 = arith.constant 0 : index
    %43 = vector.load %arg1[%c0_34, %c3_35, %c0_36, %c0_37] : memref<2x4x32x16xf32, #tpu.memory_space<vmem>>, vector<2x1x32x16xf32>
    %44 = vector.shape_cast %43 : vector<2x1x32x16xf32> to vector<2x32x16xf32>
    %45 = arith.subf %44, %23 : vector<2x32x16xf32>
    %46 = math.exp %45 : vector<2x32x16xf32>
    %47 = arith.addf %42, %46 : vector<2x32x16xf32>
    %48 = math.log %47 : vector<2x32x16xf32>
    %49 = arith.addf %48, %23 : vector<2x32x16xf32>
    %50 = arith.subf %49, %26 : vector<2x32x16xf32>
    %c0_i32_38 = arith.constant 0 : i32
    %51 = vector.broadcast %c0_i32_38 : i32 to vector<2x32x16xi32>
    %52 = arith.cmpi sge, %0, %51 : vector<2x32x16xi32>
    %cst_39 = arith.constant 0.000000e+00 : f32
    %53 = vector.broadcast %cst_39 : f32 to vector<2x32x16xf32>
    %54 = arith.select %52, %50, %53 : vector<2x32x16xi1>, vector<2x32x16xf32>
    %55 = vector.shape_cast %54 : vector<2x32x16xf32> to vector<1x2x32x16xf32>
    %cst_40 = arith.constant dense<0.000000e+00> : vector<1xf32>
    %56 = vector.multi_reduction <add>, %55, %cst_40 [1, 2, 3] : vector<1x2x32x16xf32> to vector<1xf32>
    %57 = vector.shape_cast %56 : vector<1xf32> to vector<1x1x1x1xf32>
    %58 = vector.extract %57[0, 0, 0, 0] : f32 from vector<1x1x1x1xf32>
    %c0_41 = arith.constant 0 : index
    %c0_42 = arith.constant 0 : index
    %c0_43 = arith.constant 0 : index
    %c0_44 = arith.constant 0 : index
    %59 = vector.load %arg2[%c0_41, %c0_42, %c0_43, %c0_44] : memref<2x4x32x16xf32, #tpu.memory_space<vmem>>, vector<2x1x32x16xf32>
    %60 = vector.shape_cast %59 : vector<2x1x32x16xf32> to vector<2x32x16xf32>
    %c0_i32_45 = arith.constant 0 : i32
    %61 = vector.broadcast %c0_i32_45 : i32 to vector<2x32x16xi32>
    %62 = arith.cmpi eq, %1, %61 : vector<2x32x16xi32>
    %cst_46 = arith.constant 0.000000e+00 : f32
    %63 = vector.broadcast %cst_46 : f32 to vector<2x32x16xf32>
    %64 = arith.select %62, %60, %63 : vector<2x32x16xi1>, vector<2x32x16xf32>
    %c0_47 = arith.constant 0 : index
    %c1_48 = arith.constant 1 : index
    %c0_49 = arith.constant 0 : index
    %c0_50 = arith.constant 0 : index
    %65 = vector.load %arg2[%c0_47, %c1_48, %c0_49, %c0_50] : memref<2x4x32x16xf32, #tpu.memory_space<vmem>>, vector<2x1x32x16xf32>
    %66 = vector.shape_cast %65 : vector<2x1x32x16xf32> to vector<2x32x16xf32>
    %67 = arith.maximumf %60, %66 : vector<2x32x16xf32>
    %c1_i32_51 = arith.constant 1 : i32
    %68 = vector.broadcast %c1_i32_51 : i32 to vector<2x32x16xi32>
    %69 = arith.cmpi eq, %1, %68 : vector<2x32x16xi32>
    %70 = arith.select %69, %66, %64 : vector<2x32x16xi1>, vector<2x32x16xf32>
    %c0_52 = arith.constant 0 : index
    %c2_53 = arith.constant 2 : index
    %c0_54 = arith.constant 0 : index
    %c0_55 = arith.constant 0 : index
    %71 = vector.load %arg2[%c0_52, %c2_53, %c0_54, %c0_55] : memref<2x4x32x16xf32, #tpu.memory_space<vmem>>, vector<2x1x32x16xf32>
    %72 = vector.shape_cast %71 : vector<2x1x32x16xf32> to vector<2x32x16xf32>
    %73 = arith.maximumf %67, %72 : vector<2x32x16xf32>
    %c2_i32_56 = arith.constant 2 : i32
    %74 = vector.broadcast %c2_i32_56 : i32 to vector<2x32x16xi32>
    %75 = arith.cmpi eq, %1, %74 : vector<2x32x16xi32>
    %76 = arith.select %75, %72, %70 : vector<2x32x16xi1>, vector<2x32x16xf32>
    %c0_57 = arith.constant 0 : index
    %c3_58 = arith.constant 3 : index
    %c0_59 = arith.constant 0 : index
    %c0_60 = arith.constant 0 : index
    %77 = vector.load %arg2[%c0_57, %c3_58, %c0_59, %c0_60] : memref<2x4x32x16xf32, #tpu.memory_space<vmem>>, vector<2x1x32x16xf32>
    %78 = vector.shape_cast %77 : vector<2x1x32x16xf32> to vector<2x32x16xf32>
    %79 = arith.maximumf %73, %78 : vector<2x32x16xf32>
    %c3_i32_61 = arith.constant 3 : i32
    %80 = vector.broadcast %c3_i32_61 : i32 to vector<2x32x16xi32>
    %81 = arith.cmpi eq, %1, %80 : vector<2x32x16xi32>
    %82 = arith.select %81, %78, %76 : vector<2x32x16xi1>, vector<2x32x16xf32>
    %cst_62 = arith.constant 0.000000e+00 : f32
    %83 = vector.broadcast %cst_62 : f32 to vector<2x32x16xf32>
    %c0_63 = arith.constant 0 : index
    %c0_64 = arith.constant 0 : index
    %c0_65 = arith.constant 0 : index
    %c0_66 = arith.constant 0 : index
    %84 = vector.load %arg2[%c0_63, %c0_64, %c0_65, %c0_66] : memref<2x4x32x16xf32, #tpu.memory_space<vmem>>, vector<2x1x32x16xf32>
    %85 = vector.shape_cast %84 : vector<2x1x32x16xf32> to vector<2x32x16xf32>
    %86 = arith.subf %85, %79 : vector<2x32x16xf32>
    %87 = math.exp %86 : vector<2x32x16xf32>
    %88 = arith.addf %83, %87 : vector<2x32x16xf32>
    %c0_67 = arith.constant 0 : index
    %c1_68 = arith.constant 1 : index
    %c0_69 = arith.constant 0 : index
    %c0_70 = arith.constant 0 : index
    %89 = vector.load %arg2[%c0_67, %c1_68, %c0_69, %c0_70] : memref<2x4x32x16xf32, #tpu.memory_space<vmem>>, vector<2x1x32x16xf32>
    %90 = vector.shape_cast %89 : vector<2x1x32x16xf32> to vector<2x32x16xf32>
    %91 = arith.subf %90, %79 : vector<2x32x16xf32>
    %92 = math.exp %91 : vector<2x32x16xf32>
    %93 = arith.addf %88, %92 : vector<2x32x16xf32>
    %c0_71 = arith.constant 0 : index
    %c2_72 = arith.constant 2 : index
    %c0_73 = arith.constant 0 : index
    %c0_74 = arith.constant 0 : index
    %94 = vector.load %arg2[%c0_71, %c2_72, %c0_73, %c0_74] : memref<2x4x32x16xf32, #tpu.memory_space<vmem>>, vector<2x1x32x16xf32>
    %95 = vector.shape_cast %94 : vector<2x1x32x16xf32> to vector<2x32x16xf32>
    %96 = arith.subf %95, %79 : vector<2x32x16xf32>
    %97 = math.exp %96 : vector<2x32x16xf32>
    %98 = arith.addf %93, %97 : vector<2x32x16xf32>
    %c0_75 = arith.constant 0 : index
    %c3_76 = arith.constant 3 : index
    %c0_77 = arith.constant 0 : index
    %c0_78 = arith.constant 0 : index
    %99 = vector.load %arg2[%c0_75, %c3_76, %c0_77, %c0_78] : memref<2x4x32x16xf32, #tpu.memory_space<vmem>>, vector<2x1x32x16xf32>
    %100 = vector.shape_cast %99 : vector<2x1x32x16xf32> to vector<2x32x16xf32>
    %101 = arith.subf %100, %79 : vector<2x32x16xf32>
    %102 = math.exp %101 : vector<2x32x16xf32>
    %103 = arith.addf %98, %102 : vector<2x32x16xf32>
    %104 = math.log %103 : vector<2x32x16xf32>
    %105 = arith.addf %104, %79 : vector<2x32x16xf32>
    %106 = arith.subf %105, %82 : vector<2x32x16xf32>
    %c0_i32_79 = arith.constant 0 : i32
    %107 = vector.broadcast %c0_i32_79 : i32 to vector<2x32x16xi32>
    %108 = arith.cmpi sge, %1, %107 : vector<2x32x16xi32>
    %cst_80 = arith.constant 0.000000e+00 : f32
    %109 = vector.broadcast %cst_80 : f32 to vector<2x32x16xf32>
    %110 = arith.select %108, %106, %109 : vector<2x32x16xi1>, vector<2x32x16xf32>
    %111 = vector.shape_cast %110 : vector<2x32x16xf32> to vector<1x2x32x16xf32>
    %cst_81 = arith.constant dense<0.000000e+00> : vector<1xf32>
    %112 = vector.multi_reduction <add>, %111, %cst_81 [1, 2, 3] : vector<1x2x32x16xf32> to vector<1xf32>
    %113 = vector.shape_cast %112 : vector<1xf32> to vector<1x1x1x1xf32>
    %114 = vector.extract %113[0, 0, 0, 0] : f32 from vector<1x1x1x1xf32>
    %c0_82 = arith.constant 0 : index
    %c0_83 = arith.constant 0 : index
    %c0_84 = arith.constant 0 : index
    %c0_85 = arith.constant 0 : index
    %115 = vector.load %arg3[%c0_82, %c0_83, %c0_84, %c0_85] : memref<2x1x32x16xf32, #tpu.memory_space<vmem>>, vector<2x1x32x16xf32>
    %116 = vector.shape_cast %115 : vector<2x1x32x16xf32> to vector<2x32x16xf32>
    %117 = arith.sitofp %2 : vector<2x32x16xi32> to vector<2x32x16xf32>
    %cst_86 = arith.constant 0.000000e+00 : f32
    %118 = vector.broadcast %cst_86 : f32 to vector<2x32x16xf32>
    %119 = arith.maximumf %116, %118 : vector<2x32x16xf32>
    %120 = arith.mulf %116, %117 : vector<2x32x16xf32>
    %121 = arith.subf %119, %120 : vector<2x32x16xf32>
    %122 = math.absf %116 : vector<2x32x16xf32>
    %cst_87 = arith.constant 0.000000e+00 : f32
    %123 = vector.broadcast %cst_87 : f32 to vector<2x32x16xf32>
    %124 = arith.subf %123, %122 : vector<2x32x16xf32>
    %125 = math.exp %124 : vector<2x32x16xf32>
    %cst_88 = arith.constant 1.000000e+00 : f32
    %126 = vector.broadcast %cst_88 : f32 to vector<2x32x16xf32>
    %127 = arith.addf %126, %125 : vector<2x32x16xf32>
    %cst_89 = arith.constant 1.000000e+00 : f32
    %128 = vector.broadcast %cst_89 : f32 to vector<2x32x16xf32>
    %129 = arith.cmpf oeq, %127, %128 : vector<2x32x16xf32>
    %cst_90 = arith.constant 1.000000e+00 : f32
    %130 = vector.broadcast %cst_90 : f32 to vector<2x32x16xf32>
    %131 = arith.subf %127, %130 : vector<2x32x16xf32>
    %cst_91 = arith.constant 1.000000e+00 : f32
    %132 = vector.broadcast %cst_91 : f32 to vector<2x32x16xf32>
    %133 = arith.select %129, %132, %131 : vector<2x32x16xi1>, vector<2x32x16xf32>
    %cst_92 = arith.constant 1.000000e+00 : f32
    %134 = vector.broadcast %cst_92 : f32 to vector<2x32x16xf32>
    %135 = arith.cmpf oeq, %127, %134 : vector<2x32x16xf32>
    %136 = math.log %127 : vector<2x32x16xf32>
    %137 = arith.divf %125, %133 : vector<2x32x16xf32>
    %138 = arith.mulf %136, %137 : vector<2x32x16xf32>
    %139 = arith.select %135, %125, %138 : vector<2x32x16xi1>, vector<2x32x16xf32>
    %140 = arith.addf %121, %139 : vector<2x32x16xf32>
    %c1_i32_93 = arith.constant 1 : i32
    %141 = vector.broadcast %c1_i32_93 : i32 to vector<2x32x16xi32>
    %142 = arith.cmpi eq, %2, %141 : vector<2x32x16xi32>
    %c0_i32_94 = arith.constant 0 : i32
    %143 = vector.broadcast %c0_i32_94 : i32 to vector<2x32x16xi32>
    %144 = arith.cmpi eq, %2, %143 : vector<2x32x16xi32>
    %cst_95 = arith.constant 0.000000e+00 : f32
    %145 = vector.broadcast %cst_95 : f32 to vector<2x32x16xf32>
    %146 = arith.select %142, %140, %145 : vector<2x32x16xi1>, vector<2x32x16xf32>
    %147 = vector.shape_cast %146 : vector<2x32x16xf32> to vector<1x2x32x16xf32>
    %cst_96 = arith.constant dense<0.000000e+00> : vector<1xf32>
    %148 = vector.multi_reduction <add>, %147, %cst_96 [1, 2, 3] : vector<1x2x32x16xf32> to vector<1xf32>
    %149 = vector.shape_cast %148 : vector<1xf32> to vector<1x1x1x1xf32>
    %150 = vector.extract %149[0, 0, 0, 0] : f32 from vector<1x1x1x1xf32>
    %151 = arith.select %144, %140, %145 : vector<2x32x16xi1>, vector<2x32x16xf32>
    %152 = vector.shape_cast %151 : vector<2x32x16xf32> to vector<1x2x32x16xf32>
    %cst_97 = arith.constant dense<0.000000e+00> : vector<1xf32>
    %153 = vector.multi_reduction <add>, %152, %cst_97 [1, 2, 3] : vector<1x2x32x16xf32> to vector<1xf32>
    %154 = vector.shape_cast %153 : vector<1xf32> to vector<1x1x1x1xf32>
    %155 = vector.extract %154[0, 0, 0, 0] : f32 from vector<1x1x1x1xf32>
    %156 = arith.extui %142 : vector<2x32x16xi1> to vector<2x32x16xi32>
    %157 = arith.sitofp %156 : vector<2x32x16xi32> to vector<2x32x16xf32>
    %158 = vector.shape_cast %157 : vector<2x32x16xf32> to vector<1x2x32x16xf32>
    %cst_98 = arith.constant dense<0.000000e+00> : vector<1xf32>
    %159 = vector.multi_reduction <add>, %158, %cst_98 [1, 2, 3] : vector<1x2x32x16xf32> to vector<1xf32>
    %160 = vector.shape_cast %159 : vector<1xf32> to vector<1x1x1x1xf32>
    %161 = vector.extract %160[0, 0, 0, 0] : f32 from vector<1x1x1x1xf32>
    %162 = arith.extui %144 : vector<2x32x16xi1> to vector<2x32x16xi32>
    %163 = arith.sitofp %162 : vector<2x32x16xi32> to vector<2x32x16xf32>
    %164 = vector.shape_cast %163 : vector<2x32x16xf32> to vector<1x2x32x16xf32>
    %cst_99 = arith.constant dense<0.000000e+00> : vector<1xf32>
    %165 = vector.multi_reduction <add>, %164, %cst_99 [1, 2, 3] : vector<1x2x32x16xf32> to vector<1xf32>
    %166 = vector.shape_cast %165 : vector<1xf32> to vector<1x1x1x1xf32>
    %167 = vector.extract %166[0, 0, 0, 0] : f32 from vector<1x1x1x1xf32>
    %168 = tpu.iota {dimensions = array<i32: 1>} : vector<1x8x128xi32>
    %c0_i32_100 = arith.constant 0 : i32
    %169 = vector.broadcast %c0_i32_100 : i32 to vector<1x8x128xi32>
    %170 = arith.cmpi eq, %168, %169 : vector<1x8x128xi32>
    %cst_101 = arith.constant 0.000000e+00 : f32
    %171 = vector.broadcast %58 : f32 to vector<1x8x128xf32>
    %172 = vector.broadcast %cst_101 : f32 to vector<1x8x128xf32>
    %173 = arith.select %170, %171, %172 : vector<1x8x128xi1>, vector<1x8x128xf32>
    %c1_i32_102 = arith.constant 1 : i32
    %174 = vector.broadcast %c1_i32_102 : i32 to vector<1x8x128xi32>
    %175 = arith.cmpi eq, %168, %174 : vector<1x8x128xi32>
    %176 = vector.broadcast %114 : f32 to vector<1x8x128xf32>
    %177 = arith.select %175, %176, %173 : vector<1x8x128xi1>, vector<1x8x128xf32>
    %c2_i32_103 = arith.constant 2 : i32
    %178 = vector.broadcast %c2_i32_103 : i32 to vector<1x8x128xi32>
    %179 = arith.cmpi eq, %168, %178 : vector<1x8x128xi32>
    %180 = vector.broadcast %150 : f32 to vector<1x8x128xf32>
    %181 = arith.select %179, %180, %177 : vector<1x8x128xi1>, vector<1x8x128xf32>
    %c3_i32_104 = arith.constant 3 : i32
    %182 = vector.broadcast %c3_i32_104 : i32 to vector<1x8x128xi32>
    %183 = arith.cmpi eq, %168, %182 : vector<1x8x128xi32>
    %184 = vector.broadcast %155 : f32 to vector<1x8x128xf32>
    %185 = arith.select %183, %184, %181 : vector<1x8x128xi1>, vector<1x8x128xf32>
    %c4_i32 = arith.constant 4 : i32
    %186 = vector.broadcast %c4_i32 : i32 to vector<1x8x128xi32>
    %187 = arith.cmpi eq, %168, %186 : vector<1x8x128xi32>
    %188 = vector.broadcast %161 : f32 to vector<1x8x128xf32>
    %189 = arith.select %187, %188, %185 : vector<1x8x128xi1>, vector<1x8x128xf32>
    %c5_i32 = arith.constant 5 : i32
    %190 = vector.broadcast %c5_i32 : i32 to vector<1x8x128xi32>
    %191 = arith.cmpi eq, %168, %190 : vector<1x8x128xi32>
    %192 = vector.broadcast %167 : f32 to vector<1x8x128xf32>
    %193 = arith.select %191, %192, %189 : vector<1x8x128xi1>, vector<1x8x128xf32>
    %c0_105 = arith.constant 0 : index
    %c0_106 = arith.constant 0 : index
    %c0_107 = arith.constant 0 : index
    %194 = vector.load %arg7[%c0_105, %c0_106, %c0_107] : memref<1x8x128xf32, #tpu.memory_space<vmem>>, vector<1x8x128xf32>
    tpu.vector_store %arg7[%c0_105, %c0_106, %c0_107], %193 {strides = array<i32>} : memref<1x8x128xf32, #tpu.memory_space<vmem>>, vector<1x8x128xf32>,
    return
  }
  func.func @transform_0(%arg0: i32) -> (i32, i32, i32, i32) {
    %c0_i32 = arith.constant 0 : i32
    %c0_i32_0 = arith.constant 0 : i32
    %c0_i32_1 = arith.constant 0 : i32
    %c0_i32_2 = arith.constant 0 : i32
    return %c0_i32, %c0_i32_0, %arg0, %c0_i32_1 : i32, i32, i32, i32
  }
  func.func @transform_1(%arg0: i32) -> (i32, i32, i32, i32) {
    %c0_i32 = arith.constant 0 : i32
    %c0_i32_0 = arith.constant 0 : i32
    %c0_i32_1 = arith.constant 0 : i32
    %c0_i32_2 = arith.constant 0 : i32
    return %c0_i32, %c0_i32_0, %arg0, %c0_i32_1 : i32, i32, i32, i32
  }
  func.func @transform_2(%arg0: i32) -> (i32, i32, i32, i32) {
    %c0_i32 = arith.constant 0 : i32
    %c0_i32_0 = arith.constant 0 : i32
    %c0_i32_1 = arith.constant 0 : i32
    %c0_i32_2 = arith.constant 0 : i32
    return %c0_i32, %c0_i32_0, %arg0, %c0_i32_1 : i32, i32, i32, i32
  }
  func.func @transform_3(%arg0: i32) -> (i32, i32, i32) {
    %c0_i32 = arith.constant 0 : i32
    %c0_i32_0 = arith.constant 0 : i32
    %c0_i32_1 = arith.constant 0 : i32
    return %c0_i32, %arg0, %c0_i32_0 : i32, i32, i32
  }
  func.func @transform_4(%arg0: i32) -> (i32, i32, i32) {
    %c0_i32 = arith.constant 0 : i32
    %c0_i32_0 = arith.constant 0 : i32
    %c0_i32_1 = arith.constant 0 : i32
    return %c0_i32, %arg0, %c0_i32_0 : i32, i32, i32
  }
  func.func @transform_5(%arg0: i32) -> (i32, i32, i32) {
    %c0_i32 = arith.constant 0 : i32
    %c0_i32_0 = arith.constant 0 : i32
    %c0_i32_1 = arith.constant 0 : i32
    return %c0_i32, %arg0, %c0_i32_0 : i32, i32, i32
  }
  func.func @transform_6(%arg0: i32) -> (i32, i32, i32) {
    %c0_i32 = arith.constant 0 : i32
    %c0_i32_0 = arith.constant 0 : i32
    %c0_i32_1 = arith.constant 0 : i32
    return %arg0, %c0_i32, %c0_i32_0 : i32, i32, i32
  }
}

</mosaic_0001>

<llo_original>
// kernel: tpu_custom_call.1
$region0: #{tpu_custom_call.1}
  #allocation0 [shape = 'u32[]', space=smem, size = 0x4, offset = 0x4, fixed_abs, tag = 'smem constant byte address 0x4 - core index']
  #allocation1 [shape = 'u32[144,128]{1,0:T(1,128)}', space=vmem, size = 0x12000, scoped, tag = 'internal scratch']
  %s0 = inlined_call_operand.vmem [shape: f32[2,4,32,16], index: 0, kind: input, shape index: {}]
  %s1 = inlined_call_operand.vmem [shape: f32[2,4,32,16], index: 1, kind: input, shape index: {}]
  %s2 = inlined_call_operand.vmem [shape: f32[2,1,32,16], index: 2, kind: input, shape index: {}]
  %s3 = inlined_call_operand.vmem [shape: s32[2,32,16], index: 3, kind: input, shape index: {}]
  %s4 = inlined_call_operand.vmem [shape: s32[2,32,16], index: 4, kind: input, shape index: {}]
  %s5 = inlined_call_operand.vmem [shape: s32[2,32,16], index: 5, kind: input, shape index: {}]
  %s6 = inlined_call_operand.hbm [shape: f32[1,8,128], index: 6, kind: output, shape index: {}]
  %s7 = sld [smem:[#allocation0]]
  $region34: #{tpu_custom_call.1} parent=0
    _
  %s9 = ssub.s32 1, %s7
  %s10 = scalar_select 0, %s9, %s7
  $region1: #{tpu_custom_call.1} parent=0
    #allocation2 [shape = 'u8[4096]{0}', space=vmem, size = 0x1000, scoped, tag = 'output window, operand 0, single buffered']
    #allocation3 [shape = 's32[1]{0}', space=sflag, size = 0x4, scoped, tag = 'scoped memory for tpu_custom_call.1']
    %11 = vsyncpa [#allocation3], 0
    // Predicated region
    $region2: #{tpu_custom_call.1} parent=1 // pred_check
      _
    $region3: #{tpu_custom_call.1} parent=1 // pred_check_branch
      %13 = sbr.rel (0) target = $region5
    $region4: #{tpu_custom_call.1} parent=1 // pred_region
      _
    $region5: #{tpu_custom_call.1} parent=1 // pred_fallthru
      _
    // Predicated region
    $region6: #{tpu_custom_call.1} parent=1 // pred_check
      _
    $region7: #{tpu_custom_call.1} parent=1 // pred_check_branch
      %15 = sbr.rel (0) target = $region9
    $region8: #{tpu_custom_call.1} parent=1 // pred_region
      _
    $region9: #{tpu_custom_call.1} parent=1 // pred_fallthru
      _
    // Predicated region
    $region10: #{tpu_custom_call.1} parent=1 // pred_check
      _
    $region11: #{tpu_custom_call.1} parent=1 // pred_check_branch
      %17 = sbr.rel (0) target = $region13
    $region12: #{tpu_custom_call.1} parent=1 // pred_region
      _
    $region13: #{tpu_custom_call.1} parent=1 // pred_fallthru
      _
    // Predicated region
    $region14: #{tpu_custom_call.1} parent=1 // pred_check
      _
    $region15: #{tpu_custom_call.1} parent=1 // pred_check_branch
      %19 = sbr.rel (0) target = $region17
    $region16: #{tpu_custom_call.1} parent=1 // pred_region
      _
    $region17: #{tpu_custom_call.1} parent=1 // pred_fallthru
      _
    // Predicated region
    $region18: #{tpu_custom_call.1} parent=1 // pred_check
      _
    $region19: #{tpu_custom_call.1} parent=1 // pred_check_branch
      %21 = sbr.rel (0) target = $region21
    $region20: #{tpu_custom_call.1} parent=1 // pred_region
      _
    $region21: #{tpu_custom_call.1} parent=1 // pred_fallthru
      _
    // Predicated region
    $region22: #{tpu_custom_call.1} parent=1 // pred_check
      _
    $region23: #{tpu_custom_call.1} parent=1 // pred_check_branch
      %23 = sbr.rel (0) target = $region25
    $region24: #{tpu_custom_call.1} parent=1 // pred_region
      _
    $region25: #{tpu_custom_call.1} parent=1 // pred_fallthru
      _
    %v24 = vld [vmem:[%s3] sm:$0xff]
    %v25 = vld [vmem:[%s3 + $0x8] sm:$0xff]
    %v26 = vld [vmem:[%s3 + $0x10] sm:$0xff]
    %v27 = vld [vmem:[%s3 + $0x18] sm:$0xff]
    %v28 = vld [vmem:[%s3 + $0x20] sm:$0xff]
    %v29 = vld [vmem:[%s3 + $0x28] sm:$0xff]
    %v30 = vld [vmem:[%s3 + $0x30] sm:$0xff]
    %v31 = vld [vmem:[%s3 + $0x38] sm:$0xff]
    %v32 = vld [vmem:[%s4] sm:$0xff]
    %v33 = vld [vmem:[%s4 + $0x8] sm:$0xff]
    %v34 = vld [vmem:[%s4 + $0x10] sm:$0xff]
    %v35 = vld [vmem:[%s4 + $0x18] sm:$0xff]
    %v36 = vld [vmem:[%s4 + $0x20] sm:$0xff]
    %v37 = vld [vmem:[%s4 + $0x28] sm:$0xff]
    %v38 = vld [vmem:[%s4 + $0x30] sm:$0xff]
    %v39 = vld [vmem:[%s4 + $0x38] sm:$0xff]
    %v40 = vld [vmem:[%s5] sm:$0xff]
    %v41 = vld [vmem:[%s5 + $0x8] sm:$0xff]
    %v42 = vld [vmem:[%s5 + $0x10] sm:$0xff]
    %v43 = vld [vmem:[%s5 + $0x18] sm:$0xff]
    %v44 = vld [vmem:[%s5 + $0x20] sm:$0xff]
    %v45 = vld [vmem:[%s5 + $0x28] sm:$0xff]
    %v46 = vld [vmem:[%s5 + $0x30] sm:$0xff]
    %v47 = vld [vmem:[%s5 + $0x38] sm:$0xff]
    %v48 = vld [vmem:[%s0] sm:$0xff]
    %v49 = vld [vmem:[%s0 + $0x8] sm:$0xff]
    %v50 = vld [vmem:[%s0 + $0x10] sm:$0xff]
    %v51 = vld [vmem:[%s0 + $0x18] sm:$0xff]
    %v52 = vld [vmem:[%s0 + $0x80] sm:$0xff]
    %v53 = vld [vmem:[%s0 + $0x88] sm:$0xff]
    %v54 = vld [vmem:[%s0 + $0x90] sm:$0xff]
    %v55 = vld [vmem:[%s0 + $0x98] sm:$0xff]
    %vm56 = vcmp.eq.s32.totalorder %v24, 0
    %vm57 = vcmp.eq.s32.totalorder %v25, 0
    %vm58 = vcmp.eq.s32.totalorder %v26, 0
    %vm59 = vcmp.eq.s32.totalorder %v27, 0
    %vm60 = vcmp.eq.s32.totalorder %v28, 0
    %vm61 = vcmp.eq.s32.totalorder %v29, 0
    %vm62 = vcmp.eq.s32.totalorder %v30, 0
    %vm63 = vcmp.eq.s32.totalorder %v31, 0
    %v64 = vsel %vm56, %v48, 0.0
    %v65 = vsel %vm57, %v49, 0.0
    %v66 = vsel %vm58, %v50, 0.0
    %v67 = vsel %vm59, %v51, 0.0
    %v68 = vsel %vm60, %v52, 0.0
    %v69 = vsel %vm61, %v53, 0.0
    %v70 = vsel %vm62, %v54, 0.0
    %v71 = vsel %vm63, %v55, 0.0
    %s72 = scalar_lea.vmem %s0, 32
    %v73 = vld [vmem:[%s72] sm:$0xff]
    %v74 = vld [vmem:[%s72 + $0x8] sm:$0xff]
    %v75 = vld [vmem:[%s72 + $0x10] sm:$0xff]
    %v76 = vld [vmem:[%s72 + $0x18] sm:$0xff]
    %v77 = vld [vmem:[%s72 + $0x80] sm:$0xff]
    %v78 = vld [vmem:[%s72 + $0x88] sm:$0xff]
    %v79 = vld [vmem:[%s72 + $0x90] sm:$0xff]
    %v80 = vld [vmem:[%s72 + $0x98] sm:$0xff]
    %v81 = vmax.f32 %v48, %v73
    %v82 = vmax.f32 %v49, %v74
    %v83 = vmax.f32 %v50, %v75
    %v84 = vmax.f32 %v51, %v76
    %v85 = vmax.f32 %v52, %v77
    %v86 = vmax.f32 %v53, %v78
    %v87 = vmax.f32 %v54, %v79
    %v88 = vmax.f32 %v55, %v80
    %vm89 = vcmp.eq.s32.totalorder %v24, 1
    %vm90 = vcmp.eq.s32.totalorder %v25, 1
    %vm91 = vcmp.eq.s32.totalorder %v26, 1
    %vm92 = vcmp.eq.s32.totalorder %v27, 1
    %vm93 = vcmp.eq.s32.totalorder %v28, 1
    %vm94 = vcmp.eq.s32.totalorder %v29, 1
    %vm95 = vcmp.eq.s32.totalorder %v30, 1
    %vm96 = vcmp.eq.s32.totalorder %v31, 1
    %v97 = vsel %vm89, %v73, %v64
    %v98 = vsel %vm90, %v74, %v65
    %v99 = vsel %vm91, %v75, %v66
    %v100 = vsel %vm92, %v76, %v67
    %v101 = vsel %vm93, %v77, %v68
    %v102 = vsel %vm94, %v78, %v69
    %v103 = vsel %vm95, %v79, %v70
    %v104 = vsel %vm96, %v80, %v71
    %s105 = scalar_lea.vmem %s0, 64
    %v106 = vld [vmem:[%s105] sm:$0xff]
    %v107 = vld [vmem:[%s105 + $0x8] sm:$0xff]
    %v108 = vld [vmem:[%s105 + $0x10] sm:$0xff]
    %v109 = vld [vmem:[%s105 + $0x18] sm:$0xff]
    %v110 = vld [vmem:[%s105 + $0x80] sm:$0xff]
    %v111 = vld [vmem:[%s105 + $0x88] sm:$0xff]
    %v112 = vld [vmem:[%s105 + $0x90] sm:$0xff]
    %v113 = vld [vmem:[%s105 + $0x98] sm:$0xff]
    %v114 = vmax.f32 %v81, %v106
    %v115 = vmax.f32 %v82, %v107
    %v116 = vmax.f32 %v83, %v108
    %v117 = vmax.f32 %v84, %v109
    %v118 = vmax.f32 %v85, %v110
    %v119 = vmax.f32 %v86, %v111
    %v120 = vmax.f32 %v87, %v112
    %v121 = vmax.f32 %v88, %v113
    %vm122 = vcmp.eq.s32.totalorder %v24, 2
    %vm123 = vcmp.eq.s32.totalorder %v25, 2
    %vm124 = vcmp.eq.s32.totalorder %v26, 2
    %vm125 = vcmp.eq.s32.totalorder %v27, 2
    %vm126 = vcmp.eq.s32.totalorder %v28, 2
    %vm127 = vcmp.eq.s32.totalorder %v29, 2
    %vm128 = vcmp.eq.s32.totalorder %v30, 2
    %vm129 = vcmp.eq.s32.totalorder %v31, 2
    %v130 = vsel %vm122, %v106, %v97
    %v131 = vsel %vm123, %v107, %v98
    %v132 = vsel %vm124, %v108, %v99
    %v133 = vsel %vm125, %v109, %v100
    %v134 = vsel %vm126, %v110, %v101
    %v135 = vsel %vm127, %v111, %v102
    %v136 = vsel %vm128, %v112, %v103
    %v137 = vsel %vm129, %v113, %v104
    %s138 = scalar_lea.vmem %s0, 96
    %v139 = vld [vmem:[%s138] sm:$0xff]
    %v140 = vld [vmem:[%s138 + $0x8] sm:$0xff]
    %v141 = vld [vmem:[%s138 + $0x10] sm:$0xff]
    %v142 = vld [vmem:[%s138 + $0x18] sm:$0xff]
    %v143 = vld [vmem:[%s138 + $0x80] sm:$0xff]
    %v144 = vld [vmem:[%s138 + $0x88] sm:$0xff]
    %v145 = vld [vmem:[%s138 + $0x90] sm:$0xff]
    %v146 = vld [vmem:[%s138 + $0x98] sm:$0xff]
    %v147 = vmax.f32 %v114, %v139
    %v148 = vmax.f32 %v115, %v140
    %v149 = vmax.f32 %v116, %v141
    %v150 = vmax.f32 %v117, %v142
    %v151 = vmax.f32 %v118, %v143
    %v152 = vmax.f32 %v119, %v144
    %v153 = vmax.f32 %v120, %v145
    %v154 = vmax.f32 %v121, %v146
    %vm155 = vcmp.eq.s32.totalorder %v24, 3
    %vm156 = vcmp.eq.s32.totalorder %v25, 3
    %vm157 = vcmp.eq.s32.totalorder %v26, 3
    %vm158 = vcmp.eq.s32.totalorder %v27, 3
    %vm159 = vcmp.eq.s32.totalorder %v28, 3
    %vm160 = vcmp.eq.s32.totalorder %v29, 3
    %vm161 = vcmp.eq.s32.totalorder %v30, 3
    %vm162 = vcmp.eq.s32.totalorder %v31, 3
    %v163 = vsel %vm155, %v139, %v130
    %v164 = vsel %vm156, %v140, %v131
    %v165 = vsel %vm157, %v141, %v132
    %v166 = vsel %vm158, %v142, %v133
    %v167 = vsel %vm159, %v143, %v134
    %v168 = vsel %vm160, %v144, %v135
    %v169 = vsel %vm161, %v145, %v136
    %v170 = vsel %vm162, %v146, %v137
    %v171 = vsub.f32 %v48, %v147
    %v172 = vsub.f32 %v49, %v148
    %v173 = vsub.f32 %v50, %v149
    %v174 = vsub.f32 %v51, %v150
    %v175 = vsub.f32 %v52, %v151
    %v176 = vsub.f32 %v53, %v152
    %v177 = vsub.f32 %v54, %v153
    %v178 = vsub.f32 %v55, %v154
    %v179 = vmul.f32 %v171, 1.442695
    %v180 = vpow.pop %v179
    %v181 = vmul.f32 %v172, 1.442695
    %v182 = vpow.pop %v181
    %v183 = vmul.f32 %v173, 1.442695
    %v184 = vpow.pop %v183
    %v185 = vmul.f32 %v174, 1.442695
    %v186 = vpow.pop %v185
    %v187 = vmul.f32 %v175, 1.442695
    %v188 = vpow.pop %v187
    %v189 = vmul.f32 %v176, 1.442695
    %v190 = vpow.pop %v189
    %v191 = vmul.f32 %v177, 1.442695
    %v192 = vpow.pop %v191
    %v193 = vmul.f32 %v178, 1.442695
    %v194 = vpow.pop %v193
    %v195 = vadd.f32 %v180, 0.0
    %v196 = vadd.f32 %v182, 0.0
    %v197 = vadd.f32 %v184, 0.0
    %v198 = vadd.f32 %v186, 0.0
    %v199 = vadd.f32 %v188, 0.0
    %v200 = vadd.f32 %v190, 0.0
    %v201 = vadd.f32 %v192, 0.0
    %v202 = vadd.f32 %v194, 0.0
    %v203 = vsub.f32 %v73, %v147
    %v204 = vsub.f32 %v74, %v148
    %v205 = vsub.f32 %v75, %v149
    %v206 = vsub.f32 %v76, %v150
    %v207 = vsub.f32 %v77, %v151
    %v208 = vsub.f32 %v78, %v152
    %v209 = vsub.f32 %v79, %v153
    %v210 = vsub.f32 %v80, %v154
    %v211 = vmul.f32 %v203, 1.442695
    %v212 = vpow.pop %v211
    %v213 = vmul.f32 %v204, 1.442695
    %v214 = vpow.pop %v213
    %v215 = vmul.f32 %v205, 1.442695
    %v216 = vpow.pop %v215
    %v217 = vmul.f32 %v206, 1.442695
    %v218 = vpow.pop %v217
    %v219 = vmul.f32 %v207, 1.442695
    %v220 = vpow.pop %v219
    %v221 = vmul.f32 %v208, 1.442695
    %v222 = vpow.pop %v221
    %v223 = vmul.f32 %v209, 1.442695
    %v224 = vpow.pop %v223
    %v225 = vmul.f32 %v210, 1.442695
    %v226 = vpow.pop %v225
    %v227 = vadd.f32 %v195, %v212
    %v228 = vadd.f32 %v196, %v214
    %v229 = vadd.f32 %v197, %v216
    %v230 = vadd.f32 %v198, %v218
    %v231 = vadd.f32 %v199, %v220
    %v232 = vadd.f32 %v200, %v222
    %v233 = vadd.f32 %v201, %v224
    %v234 = vadd.f32 %v202, %v226
    %v235 = vsub.f32 %v106, %v147
    %v236 = vsub.f32 %v107, %v148
    %v237 = vsub.f32 %v108, %v149
    %v238 = vsub.f32 %v109, %v150
    %v239 = vsub.f32 %v110, %v151
    %v240 = vsub.f32 %v111, %v152
    %v241 = vsub.f32 %v112, %v153
    %v242 = vsub.f32 %v113, %v154
    %v243 = vmul.f32 %v235, 1.442695
    %v244 = vpow.pop %v243
    %v245 = vmul.f32 %v236, 1.442695
    %v246 = vpow.pop %v245
    %v247 = vmul.f32 %v237, 1.442695
    %v248 = vpow.pop %v247
    %v249 = vmul.f32 %v238, 1.442695
    %v250 = vpow.pop %v249
    %v251 = vmul.f32 %v239, 1.442695
    %v252 = vpow.pop %v251
    %v253 = vmul.f32 %v240, 1.442695
    %v254 = vpow.pop %v253
    %v255 = vmul.f32 %v241, 1.442695
    %v256 = vpow.pop %v255
    %v257 = vmul.f32 %v242, 1.442695
    %v258 = vpow.pop %v257
    %v259 = vadd.f32 %v227, %v244
    %v260 = vadd.f32 %v228, %v246
    %v261 = vadd.f32 %v229, %v248
    %v262 = vadd.f32 %v230, %v250
    %v263 = vadd.f32 %v231, %v252
    %v264 = vadd.f32 %v232, %v254
    %v265 = vadd.f32 %v233, %v256
    %v266 = vadd.f32 %v234, %v258
    %v267 = vsub.f32 %v139, %v147
    %v268 = vsub.f32 %v140, %v148
    %v269 = vsub.f32 %v141, %v149
    %v270 = vsub.f32 %v142, %v150
    %v271 = vsub.f32 %v143, %v151
    %v272 = vsub.f32 %v144, %v152
    %v273 = vsub.f32 %v145, %v153
    %v274 = vsub.f32 %v146, %v154
    %v275 = vmul.f32 %v267, 1.442695
    %v276 = vpow.pop %v275
    %v277 = vmul.f32 %v268, 1.442695
    %v278 = vpow.pop %v277
    %v279 = vmul.f32 %v269, 1.442695
    %v280 = vpow.pop %v279
    %v281 = vmul.f32 %v270, 1.442695
    %v282 = vpow.pop %v281
    %v283 = vmul.f32 %v271, 1.442695
    %v284 = vpow.pop %v283
    %v285 = vmul.f32 %v272, 1.442695
    %v286 = vpow.pop %v285
    %v287 = vmul.f32 %v273, 1.442695
    %v288 = vpow.pop %v287
    %v289 = vmul.f32 %v274, 1.442695
    %v290 = vpow.pop %v289
    %v291 = vadd.f32 %v259, %v276
    %v292 = vadd.f32 %v260, %v278
    %v293 = vadd.f32 %v261, %v280
    %v294 = vadd.f32 %v262, %v282
    %v295 = vadd.f32 %v263, %v284
    %v296 = vadd.f32 %v264, %v286
    %v297 = vadd.f32 %v265, %v288
    %v298 = vadd.f32 %v266, %v290
    %v299 = vlog2.pop %v291
    %v300 = vmul.f32 %v299, 0.6931472
    %v301 = vlog2.pop %v292
    %v302 = vmul.f32 %v301, 0.6931472
    %v303 = vlog2.pop %v293
    %v304 = vmul.f32 %v303, 0.6931472
    %v305 = vlog2.pop %v294
    %v306 = vmul.f32 %v305, 0.6931472
    %v307 = vlog2.pop %v295
    %v308 = vmul.f32 %v307, 0.6931472
    %v309 = vlog2.pop %v296
    %v310 = vmul.f32 %v309, 0.6931472
    %v311 = vlog2.pop %v297
    %v312 = vmul.f32 %v311, 0.6931472
    %v313 = vlog2.pop %v298
    %v314 = vmul.f32 %v313, 0.6931472
    %v315 = vadd.f32 %v300, %v147
    %v316 = vadd.f32 %v302, %v148
    %v317 = vadd.f32 %v304, %v149
    %v318 = vadd.f32 %v306, %v150
    %v319 = vadd.f32 %v308, %v151
    %v320 = vadd.f32 %v310, %v152
    %v321 = vadd.f32 %v312, %v153
    %v322 = vadd.f32 %v314, %v154
    %v323 = vsub.f32 %v315, %v163
    %v324 = vsub.f32 %v316, %v164
    %v325 = vsub.f32 %v317, %v165
    %v326 = vsub.f32 %v318, %v166
    %v327 = vsub.f32 %v319, %v167
    %v328 = vsub.f32 %v320, %v168
    %v329 = vsub.f32 %v321, %v169
    %v330 = vsub.f32 %v322, %v170
    %vm331 = vcmp.ge.s32.totalorder %v24, 0
    %vm332 = vcmp.ge.s32.totalorder %v25, 0
    %vm333 = vcmp.ge.s32.totalorder %v26, 0
    %vm334 = vcmp.ge.s32.totalorder %v27, 0
    %vm335 = vcmp.ge.s32.totalorder %v28, 0
    %vm336 = vcmp.ge.s32.totalorder %v29, 0
    %vm337 = vcmp.ge.s32.totalorder %v30, 0
    %vm338 = vcmp.ge.s32.totalorder %v31, 0
    %v339 = vsel %vm331, %v323, 0.0
    %v340 = vsel %vm332, %v324, 0.0
    %v341 = vsel %vm333, %v325, 0.0
    %v342 = vsel %vm334, %v326, 0.0
    %v343 = vsel %vm335, %v327, 0.0
    %v344 = vsel %vm336, %v328, 0.0
    %v345 = vsel %vm337, %v329, 0.0
    %v346 = vsel %vm338, %v330, 0.0
    %vm347 = vcmask 130048
    %v348 = vsel %vm347, %v339, 0.0
    %v349 = vsel %vm347, %v340, 0.0
    %v350 = vadd.f32 %v348, %v349
    %v351 = vsel %vm347, %v341, 0.0
    %v352 = vadd.f32 %v350, %v351
    %v353 = vsel %vm347, %v342, 0.0
    %v354 = vadd.f32 %v352, %v353
    %v355 = vsel %vm347, %v343, 0.0
    %v356 = vadd.f32 %v354, %v355
    %v357 = vsel %vm347, %v344, 0.0
    %v358 = vadd.f32 %v356, %v357
    %v359 = vsel %vm347, %v345, 0.0
    %v360 = vadd.f32 %v358, %v359
    %v361 = vsel %vm347, %v346, 0.0
    %v362 = vadd.f32 %v360, %v361
    %363 = vadd.xlane.f32.xlu0 %v362
    %v364 = vpop.xlane.xlu0 %363
    %v365 = vrot.slane %v364, 4
    %v366 = vadd.f32 %v364, %v365
    %v367 = vrot.slane %v366, 2
    %v368 = vadd.f32 %v366, %v367
    %v369 = vrot.slane %v368, 1
    %v370 = vadd.f32 %v368, %v369
    %s371 = vtos %v370
    %v372 = vld [vmem:[%s1] sm:$0xff]
    %v373 = vld [vmem:[%s1 + $0x8] sm:$0xff]
    %v374 = vld [vmem:[%s1 + $0x10] sm:$0xff]
    %v375 = vld [vmem:[%s1 + $0x18] sm:$0xff]
    %v376 = vld [vmem:[%s1 + $0x80] sm:$0xff]
    %v377 = vld [vmem:[%s1 + $0x88] sm:$0xff]
    %v378 = vld [vmem:[%s1 + $0x90] sm:$0xff]
    %v379 = vld [vmem:[%s1 + $0x98] sm:$0xff]
    %vm380 = vcmp.eq.s32.totalorder %v32, 0
    %vm381 = vcmp.eq.s32.totalorder %v33, 0
    %vm382 = vcmp.eq.s32.totalorder %v34, 0
    %vm383 = vcmp.eq.s32.totalorder %v35, 0
    %vm384 = vcmp.eq.s32.totalorder %v36, 0
    %vm385 = vcmp.eq.s32.totalorder %v37, 0
    %vm386 = vcmp.eq.s32.totalorder %v38, 0
    %vm387 = vcmp.eq.s32.totalorder %v39, 0
    %v388 = vsel %vm380, %v372, 0.0
    %v389 = vsel %vm381, %v373, 0.0
    %v390 = vsel %vm382, %v374, 0.0
    %v391 = vsel %vm383, %v375, 0.0
    %v392 = vsel %vm384, %v376, 0.0
    %v393 = vsel %vm385, %v377, 0.0
    %v394 = vsel %vm386, %v378, 0.0
    %v395 = vsel %vm387, %v379, 0.0
    %s396 = scalar_lea.vmem %s1, 32
    %v397 = vld [vmem:[%s396] sm:$0xff]
    %v398 = vld [vmem:[%s396 + $0x8] sm:$0xff]
    %v399 = vld [vmem:[%s396 + $0x10] sm:$0xff]
    %v400 = vld [vmem:[%s396 + $0x18] sm:$0xff]
    %v401 = vld [vmem:[%s396 + $0x80] sm:$0xff]
    %v402 = vld [vmem:[%s396 + $0x88] sm:$0xff]
    %v403 = vld [vmem:[%s396 + $0x90] sm:$0xff]
    %v404 = vld [vmem:[%s396 + $0x98] sm:$0xff]
    %v405 = vmax.f32 %v372, %v397
    %v406 = vmax.f32 %v373, %v398
    %v407 = vmax.f32 %v374, %v399
    %v408 = vmax.f32 %v375, %v400
    %v409 = vmax.f32 %v376, %v401
    %v410 = vmax.f32 %v377, %v402
    %v411 = vmax.f32 %v378, %v403
    %v412 = vmax.f32 %v379, %v404
    %vm413 = vcmp.eq.s32.totalorder %v32, 1
    %vm414 = vcmp.eq.s32.totalorder %v33, 1
    %vm415 = vcmp.eq.s32.totalorder %v34, 1
    %vm416 = vcmp.eq.s32.totalorder %v35, 1
    %vm417 = vcmp.eq.s32.totalorder %v36, 1
    %vm418 = vcmp.eq.s32.totalorder %v37, 1
    %vm419 = vcmp.eq.s32.totalorder %v38, 1
    %vm420 = vcmp.eq.s32.totalorder %v39, 1
    %v421 = vsel %vm413, %v397, %v388
    %v422 = vsel %vm414, %v398, %v389
    %v423 = vsel %vm415, %v399, %v390
    %v424 = vsel %vm416, %v400, %v391
    %v425 = vsel %vm417, %v401, %v392
    %v426 = vsel %vm418, %v402, %v393
    %v427 = vsel %vm419, %v403, %v394
    %v428 = vsel %vm420, %v404, %v395
    %s429 = scalar_lea.vmem %s1, 64
    %v430 = vld [vmem:[%s429] sm:$0xff]
    %v431 = vld [vmem:[%s429 + $0x8] sm:$0xff]
    %v432 = vld [vmem:[%s429 + $0x10] sm:$0xff]
    %v433 = vld [vmem:[%s429 + $0x18] sm:$0xff]
    %v434 = vld [vmem:[%s429 + $0x80] sm:$0xff]
    %v435 = vld [vmem:[%s429 + $0x88] sm:$0xff]
    %v436 = vld [vmem:[%s429 + $0x90] sm:$0xff]
    %v437 = vld [vmem:[%s429 + $0x98] sm:$0xff]
    %v438 = vmax.f32 %v405, %v430
    %v439 = vmax.f32 %v406, %v431
    %v440 = vmax.f32 %v407, %v432
    %v441 = vmax.f32 %v408, %v433
    %v442 = vmax.f32 %v409, %v434
    %v443 = vmax.f32 %v410, %v435
    %v444 = vmax.f32 %v411, %v436
    %v445 = vmax.f32 %v412, %v437
    %vm446 = vcmp.eq.s32.totalorder %v32, 2
    %vm447 = vcmp.eq.s32.totalorder %v33, 2
    %vm448 = vcmp.eq.s32.totalorder %v34, 2
    %vm449 = vcmp.eq.s32.totalorder %v35, 2
    %vm450 = vcmp.eq.s32.totalorder %v36, 2
    %vm451 = vcmp.eq.s32.totalorder %v37, 2
    %vm452 = vcmp.eq.s32.totalorder %v38, 2
    %vm453 = vcmp.eq.s32.totalorder %v39, 2
    %v454 = vsel %vm446, %v430, %v421
    %v455 = vsel %vm447, %v431, %v422
    %v456 = vsel %vm448, %v432, %v423
    %v457 = vsel %vm449, %v433, %v424
    %v458 = vsel %vm450, %v434, %v425
    %v459 = vsel %vm451, %v435, %v426
    %v460 = vsel %vm452, %v436, %v427
    %v461 = vsel %vm453, %v437, %v428
    %s462 = scalar_lea.vmem %s1, 96
    %v463 = vld [vmem:[%s462] sm:$0xff]
    %v464 = vld [vmem:[%s462 + $0x8] sm:$0xff]
    %v465 = vld [vmem:[%s462 + $0x10] sm:$0xff]
    %v466 = vld [vmem:[%s462 + $0x18] sm:$0xff]
    %v467 = vld [vmem:[%s462 + $0x80] sm:$0xff]
    %v468 = vld [vmem:[%s462 + $0x88] sm:$0xff]
    %v469 = vld [vmem:[%s462 + $0x90] sm:$0xff]
    %v470 = vld [vmem:[%s462 + $0x98] sm:$0xff]
    %v471 = vmax.f32 %v438, %v463
    %v472 = vmax.f32 %v439, %v464
    %v473 = vmax.f32 %v440, %v465
    %v474 = vmax.f32 %v441, %v466
    %v475 = vmax.f32 %v442, %v467
    %v476 = vmax.f32 %v443, %v468
    %v477 = vmax.f32 %v444, %v469
    %v478 = vmax.f32 %v445, %v470
    %vm479 = vcmp.eq.s32.totalorder %v32, 3
    %vm480 = vcmp.eq.s32.totalorder %v33, 3
    %vm481 = vcmp.eq.s32.totalorder %v34, 3
    %vm482 = vcmp.eq.s32.totalorder %v35, 3
    %vm483 = vcmp.eq.s32.totalorder %v36, 3
    %vm484 = vcmp.eq.s32.totalorder %v37, 3
    %vm485 = vcmp.eq.s32.totalorder %v38, 3
    %vm486 = vcmp.eq.s32.totalorder %v39, 3
    %v487 = vsel %vm479, %v463, %v454
    %v488 = vsel %vm480, %v464, %v455
    %v489 = vsel %vm481, %v465, %v456
    %v490 = vsel %vm482, %v466, %v457
    %v491 = vsel %vm483, %v467, %v458
    %v492 = vsel %vm484, %v468, %v459
    %v493 = vsel %vm485, %v469, %v460
    %v494 = vsel %vm486, %v470, %v461
    %v495 = vsub.f32 %v372, %v471
    %v496 = vsub.f32 %v373, %v472
    %v497 = vsub.f32 %v374, %v473
    %v498 = vsub.f32 %v375, %v474
    %v499 = vsub.f32 %v376, %v475
    %v500 = vsub.f32 %v377, %v476
    %v501 = vsub.f32 %v378, %v477
    %v502 = vsub.f32 %v379, %v478
    %v503 = vmul.f32 %v495, 1.442695
    %v504 = vpow.pop %v503
    %v505 = vmul.f32 %v496, 1.442695
    %v506 = vpow.pop %v505
    %v507 = vmul.f32 %v497, 1.442695
    %v508 = vpow.pop %v507
    %v509 = vmul.f32 %v498, 1.442695
    %v510 = vpow.pop %v509
    %v511 = vmul.f32 %v499, 1.442695
    %v512 = vpow.pop %v511
    %v513 = vmul.f32 %v500, 1.442695
    %v514 = vpow.pop %v513
    %v515 = vmul.f32 %v501, 1.442695
    %v516 = vpow.pop %v515
    %v517 = vmul.f32 %v502, 1.442695
    %v518 = vpow.pop %v517
    %v519 = vadd.f32 %v504, 0.0
    %v520 = vadd.f32 %v506, 0.0
    %v521 = vadd.f32 %v508, 0.0
    %v522 = vadd.f32 %v510, 0.0
    %v523 = vadd.f32 %v512, 0.0
    %v524 = vadd.f32 %v514, 0.0
    %v525 = vadd.f32 %v516, 0.0
    %v526 = vadd.f32 %v518, 0.0
    %v527 = vsub.f32 %v397, %v471
    %v528 = vsub.f32 %v398, %v472
    %v529 = vsub.f32 %v399, %v473
    %v530 = vsub.f32 %v400, %v474
    %v531 = vsub.f32 %v401, %v475
    %v532 = vsub.f32 %v402, %v476
    %v533 = vsub.f32 %v403, %v477
    %v534 = vsub.f32 %v404, %v478
    %v535 = vmul.f32 %v527, 1.442695
    %v536 = vpow.pop %v535
    %v537 = vmul.f32 %v528, 1.442695
    %v538 = vpow.pop %v537
    %v539 = vmul.f32 %v529, 1.442695
    %v540 = vpow.pop %v539
    %v541 = vmul.f32 %v530, 1.442695
    %v542 = vpow.pop %v541
    %v543 = vmul.f32 %v531, 1.442695
    %v544 = vpow.pop %v543
    %v545 = vmul.f32 %v532, 1.442695
    %v546 = vpow.pop %v545
    %v547 = vmul.f32 %v533, 1.442695
    %v548 = vpow.pop %v547
    %v549 = vmul.f32 %v534, 1.442695
    %v550 = vpow.pop %v549
    %v551 = vadd.f32 %v519, %v536
    %v552 = vadd.f32 %v520, %v538
    %v553 = vadd.f32 %v521, %v540
    %v554 = vadd.f32 %v522, %v542
    %v555 = vadd.f32 %v523, %v544
    %v556 = vadd.f32 %v524, %v546
    %v557 = vadd.f32 %v525, %v548
    %v558 = vadd.f32 %v526, %v550
    %v559 = vsub.f32 %v430, %v471
    %v560 = vsub.f32 %v431, %v472
    %v561 = vsub.f32 %v432, %v473
    %v562 = vsub.f32 %v433, %v474
    %v563 = vsub.f32 %v434, %v475
    %v564 = vsub.f32 %v435, %v476
    %v565 = vsub.f32 %v436, %v477
    %v566 = vsub.f32 %v437, %v478
    %v567 = vmul.f32 %v559, 1.442695
    %v568 = vpow.pop %v567
    %v569 = vmul.f32 %v560, 1.442695
    %v570 = vpow.pop %v569
    %v571 = vmul.f32 %v561, 1.442695
    %v572 = vpow.pop %v571
    %v573 = vmul.f32 %v562, 1.442695
    %v574 = vpow.pop %v573
    %v575 = vmul.f32 %v563, 1.442695
    %v576 = vpow.pop %v575
    %v577 = vmul.f32 %v564, 1.442695
    %v578 = vpow.pop %v577
    %v579 = vmul.f32 %v565, 1.442695
    %v580 = vpow.pop %v579
    %v581 = vmul.f32 %v566, 1.442695
    %v582 = vpow.pop %v581
    %v583 = vadd.f32 %v551, %v568
    %v584 = vadd.f32 %v552, %v570
    %v585 = vadd.f32 %v553, %v572
    %v586 = vadd.f32 %v554, %v574
    %v587 = vadd.f32 %v555, %v576
    %v588 = vadd.f32 %v556, %v578
    %v589 = vadd.f32 %v557, %v580
    %v590 = vadd.f32 %v558, %v582
    %v591 = vsub.f32 %v463, %v471
    %v592 = vsub.f32 %v464, %v472
    %v593 = vsub.f32 %v465, %v473
    %v594 = vsub.f32 %v466, %v474
    %v595 = vsub.f32 %v467, %v475
    %v596 = vsub.f32 %v468, %v476
    %v597 = vsub.f32 %v469, %v477
    %v598 = vsub.f32 %v470, %v478
    %v599 = vmul.f32 %v591, 1.442695
    %v600 = vpow.pop %v599
    %v601 = vmul.f32 %v592, 1.442695
    %v602 = vpow.pop %v601
    %v603 = vmul.f32 %v593, 1.442695
    %v604 = vpow.pop %v603
    %v605 = vmul.f32 %v594, 1.442695
    %v606 = vpow.pop %v605
    %v607 = vmul.f32 %v595, 1.442695
    %v608 = vpow.pop %v607
    %v609 = vmul.f32 %v596, 1.442695
    %v610 = vpow.pop %v609
    %v611 = vmul.f32 %v597, 1.442695
    %v612 = vpow.pop %v611
    %v613 = vmul.f32 %v598, 1.442695
    %v614 = vpow.pop %v613
    %v615 = vadd.f32 %v583, %v600
    %v616 = vadd.f32 %v584, %v602
    %v617 = vadd.f32 %v585, %v604
    %v618 = vadd.f32 %v586, %v606
    %v619 = vadd.f32 %v587, %v608
    %v620 = vadd.f32 %v588, %v610
    %v621 = vadd.f32 %v589, %v612
    %v622 = vadd.f32 %v590, %v614
    %v623 = vlog2.pop %v615
    %v624 = vmul.f32 %v623, 0.6931472
    %v625 = vlog2.pop %v616
    %v626 = vmul.f32 %v625, 0.6931472
    %v627 = vlog2.pop %v617
    %v628 = vmul.f32 %v627, 0.6931472
    %v629 = vlog2.pop %v618
    %v630 = vmul.f32 %v629, 0.6931472
    %v631 = vlog2.pop %v619
    %v632 = vmul.f32 %v631, 0.6931472
    %v633 = vlog2.pop %v620
    %v634 = vmul.f32 %v633, 0.6931472
    %v635 = vlog2.pop %v621
    %v636 = vmul.f32 %v635, 0.6931472
    %v637 = vlog2.pop %v622
    %v638 = vmul.f32 %v637, 0.6931472
    %v639 = vadd.f32 %v624, %v471
    %v640 = vadd.f32 %v626, %v472
    %v641 = vadd.f32 %v628, %v473
    %v642 = vadd.f32 %v630, %v474
    %v643 = vadd.f32 %v632, %v475
    %v644 = vadd.f32 %v634, %v476
    %v645 = vadd.f32 %v636, %v477
    %v646 = vadd.f32 %v638, %v478
    %v647 = vsub.f32 %v639, %v487
    %v648 = vsub.f32 %v640, %v488
    %v649 = vsub.f32 %v641, %v489
    %v650 = vsub.f32 %v642, %v490
    %v651 = vsub.f32 %v643, %v491
    %v652 = vsub.f32 %v644, %v492
    %v653 = vsub.f32 %v645, %v493
    %v654 = vsub.f32 %v646, %v494
    %vm655 = vcmp.ge.s32.totalorder %v32, 0
    %vm656 = vcmp.ge.s32.totalorder %v33, 0
    %vm657 = vcmp.ge.s32.totalorder %v34, 0
    %vm658 = vcmp.ge.s32.totalorder %v35, 0
    %vm659 = vcmp.ge.s32.totalorder %v36, 0
    %vm660 = vcmp.ge.s32.totalorder %v37, 0
    %vm661 = vcmp.ge.s32.totalorder %v38, 0
    %vm662 = vcmp.ge.s32.totalorder %v39, 0
    %v663 = vsel %vm655, %v647, 0.0
    %v664 = vsel %vm656, %v648, 0.0
    %v665 = vsel %vm657, %v649, 0.0
    %v666 = vsel %vm658, %v650, 0.0
    %v667 = vsel %vm659, %v651, 0.0
    %v668 = vsel %vm660, %v652, 0.0
    %v669 = vsel %vm661, %v653, 0.0
    %v670 = vsel %vm662, %v654, 0.0
    %v671 = vsel %vm347, %v663, 0.0
    %v672 = vsel %vm347, %v664, 0.0
    %v673 = vadd.f32 %v671, %v672
    %v674 = vsel %vm347, %v665, 0.0
    %v675 = vadd.f32 %v673, %v674
    %v676 = vsel %vm347, %v666, 0.0
    %v677 = vadd.f32 %v675, %v676
    %v678 = vsel %vm347, %v667, 0.0
    %v679 = vadd.f32 %v677, %v678
    %v680 = vsel %vm347, %v668, 0.0
    %v681 = vadd.f32 %v679, %v680
    %v682 = vsel %vm347, %v669, 0.0
    %v683 = vadd.f32 %v681, %v682
    %v684 = vsel %vm347, %v670, 0.0
    %v685 = vadd.f32 %v683, %v684
    %686 = vadd.xlane.f32.xlu0 %v685
    %v687 = vpop.xlane.xlu0 %686
    %v688 = vrot.slane %v687, 4
    %v689 = vadd.f32 %v687, %v688
    %v690 = vrot.slane %v689, 2
    %v691 = vadd.f32 %v689, %v690
    %v692 = vrot.slane %v691, 1
    %v693 = vadd.f32 %v691, %v692
    %s694 = vtos %v693
    %v695 = vld [vmem:[%s2] sm:$0xff]
    %v696 = vld [vmem:[%s2 + $0x8] sm:$0xff]
    %v697 = vld [vmem:[%s2 + $0x10] sm:$0xff]
    %v698 = vld [vmem:[%s2 + $0x18] sm:$0xff]
    %v699 = vld [vmem:[%s2 + $0x20] sm:$0xff]
    %v700 = vld [vmem:[%s2 + $0x28] sm:$0xff]
    %v701 = vld [vmem:[%s2 + $0x30] sm:$0xff]
    %v702 = vld [vmem:[%s2 + $0x38] sm:$0xff]
    %v703 = vcvt.s32.f32 %v40
    %v704 = vcvt.s32.f32 %v41
    %v705 = vcvt.s32.f32 %v42
    %v706 = vcvt.s32.f32 %v43
    %v707 = vcvt.s32.f32 %v44
    %v708 = vcvt.s32.f32 %v45
    %v709 = vcvt.s32.f32 %v46
    %v710 = vcvt.s32.f32 %v47
    %v711 = vmax.f32 %v695, 0.0
    %v712 = vmax.f32 %v696, 0.0
    %v713 = vmax.f32 %v697, 0.0
    %v714 = vmax.f32 %v698, 0.0
    %v715 = vmax.f32 %v699, 0.0
    %v716 = vmax.f32 %v700, 0.0
    %v717 = vmax.f32 %v701, 0.0
    %v718 = vmax.f32 %v702, 0.0
    %v719 = vmul.f32 %v695, %v703
    %v720 = vmul.f32 %v696, %v704
    %v721 = vmul.f32 %v697, %v705
    %v722 = vmul.f32 %v698, %v706
    %v723 = vmul.f32 %v699, %v707
    %v724 = vmul.f32 %v700, %v708
    %v725 = vmul.f32 %v701, %v709
    %v726 = vmul.f32 %v702, %v710
    %v727 = vsub.f32 %v711, %v719
    %v728 = vsub.f32 %v712, %v720
    %v729 = vsub.f32 %v713, %v721
    %v730 = vsub.f32 %v714, %v722
    %v731 = vsub.f32 %v715, %v723
    %v732 = vsub.f32 %v716, %v724
    %v733 = vsub.f32 %v717, %v725
    %v734 = vsub.f32 %v718, %v726
    %v735 = vand.u32 2147483647, %v695
    %v736 = vand.u32 2147483647, %v696
    %v737 = vand.u32 2147483647, %v697
    %v738 = vand.u32 2147483647, %v698
    %v739 = vand.u32 2147483647, %v699
    %v740 = vand.u32 2147483647, %v700
    %v741 = vand.u32 2147483647, %v701
    %v742 = vand.u32 2147483647, %v702
    %v743 = vsub.f32 0.0, %v735
    %v744 = vsub.f32 0.0, %v736
    %v745 = vsub.f32 0.0, %v737
    %v746 = vsub.f32 0.0, %v738
    %v747 = vsub.f32 0.0, %v739
    %v748 = vsub.f32 0.0, %v740
    %v749 = vsub.f32 0.0, %v741
    %v750 = vsub.f32 0.0, %v742
    %v751 = vmul.f32 %v743, 1.442695
    %v752 = vpow.pop %v751
    %v753 = vmul.f32 %v744, 1.442695
    %v754 = vpow.pop %v753
    %v755 = vmul.f32 %v745, 1.442695
    %v756 = vpow.pop %v755
    %v757 = vmul.f32 %v746, 1.442695
    %v758 = vpow.pop %v757
    %v759 = vmul.f32 %v747, 1.442695
    %v760 = vpow.pop %v759
    %v761 = vmul.f32 %v748, 1.442695
    %v762 = vpow.pop %v761
    %v763 = vmul.f32 %v749, 1.442695
    %v764 = vpow.pop %v763
    %v765 = vmul.f32 %v750, 1.442695
    %v766 = vpow.pop %v765
    %v767 = vadd.f32 %v752, 1.0
    %v768 = vadd.f32 %v754, 1.0
    %v769 = vadd.f32 %v756, 1.0
    %v770 = vadd.f32 %v758, 1.0
    %v771 = vadd.f32 %v760, 1.0
    %v772 = vadd.f32 %v762, 1.0
    %v773 = vadd.f32 %v764, 1.0
    %v774 = vadd.f32 %v766, 1.0
    %vm775 = vcmp.eq.f32.partialorder %v767, 1.0
    %vm776 = vcmp.eq.f32.partialorder %v768, 1.0
    %vm777 = vcmp.eq.f32.partialorder %v769, 1.0
    %vm778 = vcmp.eq.f32.partialorder %v770, 1.0
    %vm779 = vcmp.eq.f32.partialorder %v771, 1.0
    %vm780 = vcmp.eq.f32.partialorder %v772, 1.0
    %vm781 = vcmp.eq.f32.partialorder %v773, 1.0
    %vm782 = vcmp.eq.f32.partialorder %v774, 1.0
    %v783 = vsub.f32 %v767, 1.0
    %v784 = vsub.f32 %v768, 1.0
    %v785 = vsub.f32 %v769, 1.0
    %v786 = vsub.f32 %v770, 1.0
    %v787 = vsub.f32 %v771, 1.0
    %v788 = vsub.f32 %v772, 1.0
    %v789 = vsub.f32 %v773, 1.0
    %v790 = vsub.f32 %v774, 1.0
    %v791 = vsel %vm775, 1.0, %v783
    %v792 = vsel %vm776, 1.0, %v784
    %v793 = vsel %vm777, 1.0, %v785
    %v794 = vsel %vm778, 1.0, %v786
    %v795 = vsel %vm779, 1.0, %v787
    %v796 = vsel %vm780, 1.0, %v788
    %v797 = vsel %vm781, 1.0, %v789
    %v798 = vsel %vm782, 1.0, %v790
    %v799 = vlog2.pop %v767
    %v800 = vmul.f32 %v799, 0.6931472
    %v801 = vlog2.pop %v768
    %v802 = vmul.f32 %v801, 0.6931472
    %v803 = vlog2.pop %v769
    %v804 = vmul.f32 %v803, 0.6931472
    %v805 = vlog2.pop %v770
    %v806 = vmul.f32 %v805, 0.6931472
    %v807 = vlog2.pop %v771
    %v808 = vmul.f32 %v807, 0.6931472
    %v809 = vlog2.pop %v772
    %v810 = vmul.f32 %v809, 0.6931472
    %v811 = vlog2.pop %v773
    %v812 = vmul.f32 %v811, 0.6931472
    %v813 = vlog2.pop %v774
    %v814 = vmul.f32 %v813, 0.6931472
    %v815 = vrcp.pop %v791
    %v816 = vmul.f32 %v752, %v815
    %v817 = vrcp.pop %v792
    %v818 = vmul.f32 %v754, %v817
    %v819 = vrcp.pop %v793
    %v820 = vmul.f32 %v756, %v819
    %v821 = vrcp.pop %v794
    %v822 = vmul.f32 %v758, %v821
    %v823 = vrcp.pop %v795
    %v824 = vmul.f32 %v760, %v823
    %v825 = vrcp.pop %v796
    %v826 = vmul.f32 %v762, %v825
    %v827 = vrcp.pop %v797
    %v828 = vmul.f32 %v764, %v827
    %v829 = vrcp.pop %v798
    %v830 = vmul.f32 %v766, %v829
    %v831 = vmul.f32 %v800, %v816
    %v832 = vmul.f32 %v802, %v818
    %v833 = vmul.f32 %v804, %v820
    %v834 = vmul.f32 %v806, %v822
    %v835 = vmul.f32 %v808, %v824
    %v836 = vmul.f32 %v810, %v826
    %v837 = vmul.f32 %v812, %v828
    %v838 = vmul.f32 %v814, %v830
    %v839 = vsel %vm775, %v752, %v831
    %v840 = vsel %vm776, %v754, %v832
    %v841 = vsel %vm777, %v756, %v833
    %v842 = vsel %vm778, %v758, %v834
    %v843 = vsel %vm779, %v760, %v835
    %v844 = vsel %vm780, %v762, %v836
    %v845 = vsel %vm781, %v764, %v837
    %v846 = vsel %vm782, %v766, %v838
    %v847 = vadd.f32 %v727, %v839
    %v848 = vadd.f32 %v728, %v840
    %v849 = vadd.f32 %v729, %v841
    %v850 = vadd.f32 %v730, %v842
    %v851 = vadd.f32 %v731, %v843
    %v852 = vadd.f32 %v732, %v844
    %v853 = vadd.f32 %v733, %v845
    %v854 = vadd.f32 %v734, %v846
    %vm855 = vcmp.eq.s32.totalorder %v40, 1
    %vm856 = vcmp.eq.s32.totalorder %v41, 1
    %vm857 = vcmp.eq.s32.totalorder %v42, 1
    %vm858 = vcmp.eq.s32.totalorder %v43, 1
    %vm859 = vcmp.eq.s32.totalorder %v44, 1
    %vm860 = vcmp.eq.s32.totalorder %v45, 1
    %vm861 = vcmp.eq.s32.totalorder %v46, 1
    %vm862 = vcmp.eq.s32.totalorder %v47, 1
    %vm863 = vcmp.eq.s32.totalorder %v40, 0
    %vm864 = vcmp.eq.s32.totalorder %v41, 0
    %vm865 = vcmp.eq.s32.totalorder %v42, 0
    %vm866 = vcmp.eq.s32.totalorder %v43, 0
    %vm867 = vcmp.eq.s32.totalorder %v44, 0
    %vm868 = vcmp.eq.s32.totalorder %v45, 0
    %vm869 = vcmp.eq.s32.totalorder %v46, 0
    %vm870 = vcmp.eq.s32.totalorder %v47, 0
    %v871 = vsel %vm855, %v847, 0.0
    %v872 = vsel %vm856, %v848, 0.0
    %v873 = vsel %vm857, %v849, 0.0
    %v874 = vsel %vm858, %v850, 0.0
    %v875 = vsel %vm859, %v851, 0.0
    %v876 = vsel %vm860, %v852, 0.0
    %v877 = vsel %vm861, %v853, 0.0
    %v878 = vsel %vm862, %v854, 0.0
    %v879 = vsel %vm347, %v871, 0.0
    %v880 = vsel %vm347, %v872, 0.0
    %v881 = vadd.f32 %v879, %v880
    %v882 = vsel %vm347, %v873, 0.0
    %v883 = vadd.f32 %v881, %v882
    %v884 = vsel %vm347, %v874, 0.0
    %v885 = vadd.f32 %v883, %v884
    %v886 = vsel %vm347, %v875, 0.0
    %v887 = vadd.f32 %v885, %v886
    %v888 = vsel %vm347, %v876, 0.0
    %v889 = vadd.f32 %v887, %v888
    %v890 = vsel %vm347, %v877, 0.0
    %v891 = vadd.f32 %v889, %v890
    %v892 = vsel %vm347, %v878, 0.0
    %v893 = vadd.f32 %v891, %v892
    %894 = vadd.xlane.f32.xlu0 %v893
    %v895 = vpop.xlane.xlu0 %894
    %v896 = vrot.slane %v895, 4
    %v897 = vadd.f32 %v895, %v896
    %v898 = vrot.slane %v897, 2
    %v899 = vadd.f32 %v897, %v898
    %v900 = vrot.slane %v899, 1
    %v901 = vadd.f32 %v899, %v900
    %s902 = vtos %v901
    %v903 = vsel %vm863, %v847, 0.0
    %v904 = vsel %vm864, %v848, 0.0
    %v905 = vsel %vm865, %v849, 0.0
    %v906 = vsel %vm866, %v850, 0.0
    %v907 = vsel %vm867, %v851, 0.0
    %v908 = vsel %vm868, %v852, 0.0
    %v909 = vsel %vm869, %v853, 0.0
    %v910 = vsel %vm870, %v854, 0.0
    %v911 = vsel %vm347, %v903, 0.0
    %v912 = vsel %vm347, %v904, 0.0
    %v913 = vadd.f32 %v911, %v912
    %v914 = vsel %vm347, %v905, 0.0
    %v915 = vadd.f32 %v913, %v914
    %v916 = vsel %vm347, %v906, 0.0
    %v917 = vadd.f32 %v915, %v916
    %v918 = vsel %vm347, %v907, 0.0
    %v919 = vadd.f32 %v917, %v918
    %v920 = vsel %vm347, %v908, 0.0
    %v921 = vadd.f32 %v919, %v920
    %v922 = vsel %vm347, %v909, 0.0
    %v923 = vadd.f32 %v921, %v922
    %v924 = vsel %vm347, %v910, 0.0
    %v925 = vadd.f32 %v923, %v924
    %926 = vadd.xlane.f32.xlu0 %v925
    %v927 = vpop.xlane.xlu0 %926
    %v928 = vrot.slane %v927, 4
    %v929 = vadd.f32 %v927, %v928
    %v930 = vrot.slane %v929, 2
    %v931 = vadd.f32 %v929, %v930
    %v932 = vrot.slane %v931, 1
    %v933 = vadd.f32 %v931, %v932
    %s934 = vtos %v933
    %v935 = vsel %vm855, 1, 0
    %v936 = vsel %vm856, 1, 0
    %v937 = vsel %vm857, 1, 0
    %v938 = vsel %vm858, 1, 0
    %v939 = vsel %vm859, 1, 0
    %v940 = vsel %vm860, 1, 0
    %v941 = vsel %vm861, 1, 0
    %v942 = vsel %vm862, 1, 0
    %v943 = vcvt.s32.f32 %v935
    %v944 = vcvt.s32.f32 %v936
    %v945 = vcvt.s32.f32 %v937
    %v946 = vcvt.s32.f32 %v938
    %v947 = vcvt.s32.f32 %v939
    %v948 = vcvt.s32.f32 %v940
    %v949 = vcvt.s32.f32 %v941
    %v950 = vcvt.s32.f32 %v942
    %v951 = vsel %vm347, %v943, 0.0
    %v952 = vsel %vm347, %v944, 0.0
    %v953 = vadd.f32 %v951, %v952
    %v954 = vsel %vm347, %v945, 0.0
    %v955 = vadd.f32 %v953, %v954
    %v956 = vsel %vm347, %v946, 0.0
    %v957 = vadd.f32 %v955, %v956
    %v958 = vsel %vm347, %v947, 0.0
    %v959 = vadd.f32 %v957, %v958
    %v960 = vsel %vm347, %v948, 0.0
    %v961 = vadd.f32 %v959, %v960
    %v962 = vsel %vm347, %v949, 0.0
    %v963 = vadd.f32 %v961, %v962
    %v964 = vsel %vm347, %v950, 0.0
    %v965 = vadd.f32 %v963, %v964
    %966 = vadd.xlane.f32.xlu0 %v965
    %v967 = vpop.xlane.xlu0 %966
    %v968 = vrot.slane %v967, 4
    %v969 = vadd.f32 %v967, %v968
    %v970 = vrot.slane %v969, 2
    %v971 = vadd.f32 %v969, %v970
    %v972 = vrot.slane %v971, 1
    %v973 = vadd.f32 %v971, %v972
    %s974 = vtos %v973
    %v975 = vsel %vm863, 1, 0
    %v976 = vsel %vm864, 1, 0
    %v977 = vsel %vm865, 1, 0
    %v978 = vsel %vm866, 1, 0
    %v979 = vsel %vm867, 1, 0
    %v980 = vsel %vm868, 1, 0
    %v981 = vsel %vm869, 1, 0
    %v982 = vsel %vm870, 1, 0
    %v983 = vcvt.s32.f32 %v975
    %v984 = vcvt.s32.f32 %v976
    %v985 = vcvt.s32.f32 %v977
    %v986 = vcvt.s32.f32 %v978
    %v987 = vcvt.s32.f32 %v979
    %v988 = vcvt.s32.f32 %v980
    %v989 = vcvt.s32.f32 %v981
    %v990 = vcvt.s32.f32 %v982
    %v991 = vsel %vm347, %v983, 0.0
    %v992 = vsel %vm347, %v984, 0.0
    %v993 = vadd.f32 %v991, %v992
    %v994 = vsel %vm347, %v985, 0.0
    %v995 = vadd.f32 %v993, %v994
    %v996 = vsel %vm347, %v986, 0.0
    %v997 = vadd.f32 %v995, %v996
    %v998 = vsel %vm347, %v987, 0.0
    %v999 = vadd.f32 %v997, %v998
    %v1000 = vsel %vm347, %v988, 0.0
    %v1001 = vadd.f32 %v999, %v1000
    %v1002 = vsel %vm347, %v989, 0.0
    %v1003 = vadd.f32 %v1001, %v1002
    %v1004 = vsel %vm347, %v990, 0.0
    %v1005 = vadd.f32 %v1003, %v1004
    %1006 = vadd.xlane.f32.xlu0 %v1005
    %v1007 = vpop.xlane.xlu0 %1006
    %v1008 = vrot.slane %v1007, 4
    %v1009 = vadd.f32 %v1007, %v1008
    %v1010 = vrot.slane %v1009, 2
    %v1011 = vadd.f32 %v1009, %v1010
    %v1012 = vrot.slane %v1011, 1
    %v1013 = vadd.f32 %v1011, %v1012
    %s1014 = vtos %v1013
    %v1015 = vlaneseq
    %v1016 = vshrl.u32 %v1015, 7
    %vm1017 = vcmp.eq.s32.totalorder %v1016, 0
    %v1018 = vstv %s371
    %v1019 = vsel %vm1017, %v1018, 0.0
    %vm1020 = vcmp.eq.s32.totalorder %v1016, 1
    %v1021 = vstv %s694
    %v1022 = vsel %vm1020, %v1021, %v1019
    %vm1023 = vcmp.eq.s32.totalorder %v1016, 2
    %v1024 = vstv %s902
    %v1025 = vsel %vm1023, %v1024, %v1022
    %vm1026 = vcmp.eq.s32.totalorder %v1016, 3
    %v1027 = vstv %s934
    %v1028 = vsel %vm1026, %v1027, %v1025
    %vm1029 = vcmp.eq.s32.totalorder %v1016, 4
    %v1030 = vstv %s974
    %v1031 = vsel %vm1029, %v1030, %v1028
    %vm1032 = vcmp.eq.s32.totalorder %v1016, 5
    %v1033 = vstv %s1014
    %v1034 = vsel %vm1032, %v1033, %v1031
    %1035 = vst [vmem:[#allocation2] sm:$0xff] %v1034
    // Predicated region
    $region26: #{tpu_custom_call.1} parent=1 // pred_check
      _
    $region27: #{tpu_custom_call.1} parent=1 // pred_check_branch
      %1037 = sbr.rel (0) target = $region29
    $region28: #{tpu_custom_call.1} parent=1 // pred_region
      %s1039 = ssub.s32 128, 128
      %1040 = vsyncadd [#allocation3], %s1039
      %s1042 = sshll.u32 [#allocation2], 4
      %s1043 = int_to_ptr.vmem [resolvable:$true] %s1042
      %1045 = dma.vmem_to_hbm [thread:$0]  %s1043, 128, %s6, [#allocation3]
    $region29: #{tpu_custom_call.1} parent=1 // pred_fallthru
      _
    // Predicated region
    $region30: #{tpu_custom_call.1} parent=1 // pred_check
      _
    $region31: #{tpu_custom_call.1} parent=1 // pred_check_branch
      %1047 = sbr.rel (0) target = $region33
    $region32: #{tpu_custom_call.1} parent=1 // pred_region
      %1048 = dma.done [#allocation3], 128
    $region33: #{tpu_custom_call.1} parent=1 // pred_fallthru
      _
    %1049 = vsyncpa [#allocation3], 1

</llo_original>
